<compile_context>
chip_gen: v7x
topology: tpu7x:2x2x1
jax: 0.10.0
libtpu: 0.0.40
codegen_flags: <defaults>
</compile_context>

<pallas_src>
import jax
import jax.numpy as jnp
from jax.experimental import pallas as pl
from jax.experimental.pallas import tpu as pltpu


NEG_SLOPE = 0.01          # nn.LeakyReLU default
OUT_PAD = 128             # lane-dense padded output width (real out_dim sliced in wrapper)


def _leaky_relu(x):
    return jnp.where(x > 0, x, NEG_SLOPE * x)


def gcn_kernel(feat_ref, adj_ref,
               w_in_ref, b_in_ref,
               w_g1_ref, b_g1_ref,
               w_fold_ref, b_fold_ref,
               out_ref):
    """Fused GCN forward for one row-tile (block-diagonal batch of graphs)."""
    x = feat_ref[...]            # (R, 2*E)  bf16
    adj = adj_ref[...]           # (R, R)    bf16, block-diag normalized adjacency

    # linear_relu_input: Linear(2E -> H) + LeakyReLU  (f32 accumulate, relu in f32)
    h = jnp.dot(x, w_in_ref[...], preferred_element_type=jnp.float32) + b_in_ref[...]
    h = _leaky_relu(h)

    # gcn1: h = Â @ (h @ W_g1) + b_g1
    h = jnp.dot(h.astype(jnp.bfloat16), w_g1_ref[...], preferred_element_type=jnp.float32)
    h = jnp.dot(adj, h.astype(jnp.bfloat16), preferred_element_type=jnp.float32) + b_g1_ref[...]

    # F.dropout(p=0.3) — identity in eval mode.
    # TODO(synk): stochastic dropout via pltpu.prng_seed/prng_random_bits for training mode.

    # gcn2 + linear_output2 folded:
    #   out = Â @ (h @ (W_g2 @ W_out)) + (b_g2 @ W_out + b_out)
    # W_fold is zero-padded to OUT_PAD columns so the store stays lane-dense.
    h = jnp.dot(h.astype(jnp.bfloat16), w_fold_ref[...], preferred_element_type=jnp.float32)
    out = jnp.dot(adj, h.astype(jnp.bfloat16), preferred_element_type=jnp.float32) + b_fold_ref[...]

    out_ref[...] = out.astype(out_ref.dtype)


def build_normalized_adj(edge_index, num_nodes):
    """Dense Â = D^{-1/2}(A + I_missing)D^{-1/2} matching torch_geometric GCNConv
    (add_remaining_self_loops: only nodes without an explicit self loop get one).
    Plain-JAX glue (vmappable)."""
    src = edge_index[0]
    dst = edge_index[1]
    a = jnp.zeros((num_nodes, num_nodes), jnp.float32)
    a = a.at[dst, src].add(1.0)                              # Â[target, source]
    diag = jnp.diagonal(a)
    missing = jnp.where(diag > 0, 0.0, 1.0)                  # only fill missing self loops
    a = a + missing[:, None] * jnp.eye(num_nodes, dtype=jnp.float32)
    deg = jnp.sum(a, axis=1)                                 # in-degree incl. self loop
    dis = jnp.where(deg > 0, 1.0 / jnp.sqrt(deg), 0.0)
    return dis[:, None] * a * dis[None, :]


def _gcn_pallas_batched(features, adjs, params, graphs_per_tile):
    """features: (B, N, F) f32; adjs: (B, N, N) f32 normalized adjacency."""
    B, N, F = features.shape
    G = graphs_per_tile
    T = -(-B // G)                # cdiv
    B_pad = T * G
    R = G * N                     # rows per tile

    pad = B_pad - B
    if pad:
        features = jnp.concatenate(
            [features, jnp.zeros((pad, N, F), features.dtype)], axis=0)
        adjs = jnp.concatenate(
            [adjs, jnp.zeros((pad, N, N), adjs.dtype)], axis=0)

    # Pack G graphs per tile: features stacked row-wise, adjacency block-diagonal.
    feat_tiles = features.reshape(T, R, F).astype(jnp.bfloat16)
    adjs_r = adjs.reshape(T, G, N, N)
    eye_g = jnp.eye(G, dtype=adjs.dtype)
    adj_tiles = jnp.einsum('gh,tgij->tgihj', eye_g, adjs_r).reshape(T, R, R)
    adj_tiles = adj_tiles.astype(jnp.bfloat16)

    # Fold gcn2 + linear_output2 (exact algebra, f32), pad to lane-dense width.
    w_out = params["w_out"].astype(jnp.float32)
    b_out = params["b_out"].astype(jnp.float32)
    w_fold = params["w_g2"].astype(jnp.float32) @ w_out              # (H, out_dim)
    b_fold = params["b_g2"].astype(jnp.float32) @ w_out + b_out      # (1, out_dim)
    H, out_dim = w_fold.shape
    w_fold = jnp.pad(w_fold, ((0, 0), (0, OUT_PAD - out_dim))).astype(jnp.bfloat16)
    b_fold = jnp.pad(b_fold, ((0, 0), (0, OUT_PAD - out_dim))).astype(jnp.float32)

    w_in = params["w_in"].astype(jnp.bfloat16)
    w_g1 = params["w_g1"].astype(jnp.bfloat16)
    b_in = params["b_in"].astype(jnp.float32)
    b_g1 = params["b_g1"].astype(jnp.float32)
    in_dim = w_in.shape[0]

    out = pl.pallas_call(
        gcn_kernel,
        out_shape=jax.ShapeDtypeStruct((T, R, OUT_PAD), jnp.float32),
        grid_spec=pltpu.PrefetchScalarGridSpec(
            num_scalar_prefetch=0,
            grid=(T,),
            in_specs=[
                # per-tile data (leading dim squeezed)
                pl.BlockSpec((None, R, F), lambda t: (t, 0, 0)),
                pl.BlockSpec((None, R, R), lambda t: (t, 0, 0)),
                # weights / biases: constant block index -> VMEM-resident across grid
                pl.BlockSpec((in_dim, H), lambda t: (0, 0)),
                pl.BlockSpec((1, H), lambda t: (0, 0)),
                pl.BlockSpec((H, H), lambda t: (0, 0)),
                pl.BlockSpec((1, H), lambda t: (0, 0)),
                pl.BlockSpec((H, OUT_PAD), lambda t: (0, 0)),
                pl.BlockSpec((1, OUT_PAD), lambda t: (0, 0)),
            ],
            out_specs=pl.BlockSpec((None, R, OUT_PAD), lambda t: (t, 0, 0)),
        ),
        compiler_params=pltpu.CompilerParams(
            dimension_semantics=("parallel",),
            vmem_limit_bytes=32 * 1024 * 1024,
        ),
    )(feat_tiles, adj_tiles, w_in, b_in, w_g1, b_g1, w_fold, b_fold)

    out = out.reshape(B_pad, N, OUT_PAD)[:B, :, :out_dim]
    return out


def gcn_forward(feature, edge_index, edge_type, params, *, graphs_per_tile=None):
    """Matches GCN.forward. Accepts a single graph (feature (N,F), edge_index (2,E))
    or a batch of graphs (feature (B,N,F), edge_index (B,2,E)).  edge_type unused,
    exactly like the PyTorch forward."""
    del edge_type
    single = feature.ndim == 2
    if single:
        feature = feature[None]
        edge_index = edge_index[None]
    B, N, _ = feature.shape
    adjs = jax.vmap(lambda ei: build_normalized_adj(ei, N))(edge_index)
    if graphs_per_tile is None:
        graphs_per_tile = max(1, min(B, max(1, 256 // N)))   # target ~256 rows / tile
    out = _gcn_pallas_batched(feature.astype(jnp.float32), adjs, params, graphs_per_tile)
    return out[0] if single else out


def init_params(key, embedding_dimension=16, hidden_dimension=128, out_dim=4):
    in_dim = embedding_dimension * 2
    ks = jax.random.split(key, 8)
    scale = 0.05
    # Weights stored as (in, out) so the kernel does x @ W.
    return {
        "w_in":  scale * jax.random.normal(ks[0], (in_dim, hidden_dimension), jnp.float32),
        "b_in":  scale * jax.random.normal(ks[1], (1, hidden_dimension), jnp.float32),
        "w_g1":  scale * jax.random.normal(ks[2], (hidden_dimension, hidden_dimension), jnp.float32),
        "b_g1":  scale * jax.random.normal(ks[3], (1, hidden_dimension), jnp.float32),
        "w_g2":  scale * jax.random.normal(ks[4], (hidden_dimension, hidden_dimension), jnp.float32),
        "b_g2":  scale * jax.random.normal(ks[5], (1, hidden_dimension), jnp.float32),
        "w_out": scale * jax.random.normal(ks[6], (hidden_dimension, out_dim), jnp.float32),
        "b_out": scale * jax.random.normal(ks[7], (1, out_dim), jnp.float32),
    }


if __name__ == "__main__":
    key = jax.random.PRNGKey(0)
    k_feat, k_edge, k_param = jax.random.split(key, 3)

    B = 64                # graphs batched per call (packed 32/tile -> 256-row tiles, grid=2)
    N = 8                 # nodes per graph
    E = 12                # edges per graph
    EMB = 16              # embedding_dimension -> feature dim is 2*EMB = 32
    HID = 128

    features = jax.random.normal(k_feat, (B, N, 2 * EMB), jnp.float32)
    edge_index = jax.random.randint(k_edge, (B, 2, E), 0, N, dtype=jnp.int32)
    edge_type = jnp.zeros((B, E), jnp.int32)   # unused by forward (relation_num=2)

    params = init_params(k_param, embedding_dimension=EMB, hidden_dimension=HID, out_dim=4)

    out = gcn_forward(features, edge_index, edge_type, params)
    out = jax.block_until_ready(out)
    assert out.shape == (B, N, 4) and out.dtype == jnp.float32
    print("KERNEL_OK")
</pallas_src>

<mosaic_0001>
module attributes {stable_mosaic.version = 11 : i64} {
  func.func @gcn_kernel(%arg0: i32, %arg1: memref<1x256x32xbf16, #tpu.memory_space<vmem>>, %arg2: memref<1x256x256xbf16, #tpu.memory_space<vmem>>, %arg3: memref<32x128xbf16, #tpu.memory_space<vmem>>, %arg4: memref<1x128xf32, #tpu.memory_space<vmem>>, %arg5: memref<128x128xbf16, #tpu.memory_space<vmem>>, %arg6: memref<1x128xf32, #tpu.memory_space<vmem>>, %arg7: memref<128x128xbf16, #tpu.memory_space<vmem>>, %arg8: memref<1x128xf32, #tpu.memory_space<vmem>>, %arg9: memref<1x256x128xf32, #tpu.memory_space<vmem>>) attributes {dimension_semantics = [#tpu.dimension_semantics<parallel>], iteration_bounds = array<i64: 2>, scalar_prefetch = 0 : i64, scratch_operands = 0 : i64, tpu.core_type = #tpu.core_type<tc>, window_params = [{transform_indices = @transform_0, window_bounds = array<i64: 1, 256, 32>}, {transform_indices = @transform_1, window_bounds = array<i64: 1, 256, 256>}, {pipeline_mode = #tpu.pipeline_mode<synchronous>, transform_indices = @transform_2, window_bounds = array<i64: 32, 128>}, {pipeline_mode = #tpu.pipeline_mode<synchronous>, transform_indices = @transform_3, window_bounds = array<i64: 1, 128>}, {pipeline_mode = #tpu.pipeline_mode<synchronous>, transform_indices = @transform_4, window_bounds = array<i64: 128, 128>}, {pipeline_mode = #tpu.pipeline_mode<synchronous>, transform_indices = @transform_5, window_bounds = array<i64: 1, 128>}, {pipeline_mode = #tpu.pipeline_mode<synchronous>, transform_indices = @transform_6, window_bounds = array<i64: 128, 128>}, {pipeline_mode = #tpu.pipeline_mode<synchronous>, transform_indices = @transform_7, window_bounds = array<i64: 1, 128>}, {transform_indices = @transform_8, window_bounds = array<i64: 1, 256, 128>}]} {
    %c0 = arith.constant 0 : index
    %c0_0 = arith.constant 0 : index
    %c0_1 = arith.constant 0 : index
    %0 = vector.load %arg1[%c0, %c0_0, %c0_1] : memref<1x256x32xbf16, #tpu.memory_space<vmem>>, vector<1x256x32xbf16>
    %1 = vector.shape_cast %0 : vector<1x256x32xbf16> to vector<256x32xbf16>
    %c0_2 = arith.constant 0 : index
    %c0_3 = arith.constant 0 : index
    %c0_4 = arith.constant 0 : index
    %2 = vector.load %arg2[%c0_2, %c0_3, %c0_4] : memref<1x256x256xbf16, #tpu.memory_space<vmem>>, vector<1x256x256xbf16>
    %3 = vector.shape_cast %2 : vector<1x256x256xbf16> to vector<256x256xbf16>
    %c0_5 = arith.constant 0 : index
    %c0_6 = arith.constant 0 : index
    %4 = vector.load %arg3[%c0_5, %c0_6] : memref<32x128xbf16, #tpu.memory_space<vmem>>, vector<32x128xbf16>
    %cst = arith.constant dense<0.000000e+00> : vector<256x128xf32>
    %5 = tpu.matmul %1, %4, %cst {dimension_numbers = #tpu.dot_dimension_numbers<[1], [0], [0], [1], [0, 0, 1, 1], [], []>} : vector<256x32xbf16>, vector<32x128xbf16>, vector<256x128xf32> -> vector<256x128xf32>
    %c0_7 = arith.constant 0 : index
    %c0_8 = arith.constant 0 : index
    %6 = vector.load %arg4[%c0_7, %c0_8] : memref<1x128xf32, #tpu.memory_space<vmem>>, vector<1x128xf32>
    %7 = vector.broadcast %6 : vector<1x128xf32> to vector<256x128xf32>
    %8 = arith.addf %5, %7 : vector<256x128xf32>
    %cst_9 = arith.constant 0.000000e+00 : f32
    %9 = vector.broadcast %cst_9 : f32 to vector<256x128xf32>
    %10 = arith.cmpf ogt, %8, %9 : vector<256x128xf32>
    %cst_10 = arith.constant 0.00999999977 : f32
    %11 = vector.broadcast %cst_10 : f32 to vector<256x128xf32>
    %12 = arith.mulf %11, %8 : vector<256x128xf32>
    %13 = arith.select %10, %8, %12 : vector<256x128xi1>, vector<256x128xf32>
    %14 = arith.truncf %13 : vector<256x128xf32> to vector<256x128xbf16>
    %c0_11 = arith.constant 0 : index
    %c0_12 = arith.constant 0 : index
    %15 = vector.load %arg5[%c0_11, %c0_12] : memref<128x128xbf16, #tpu.memory_space<vmem>>, vector<128x128xbf16>
    %cst_13 = arith.constant dense<0.000000e+00> : vector<256x128xf32>
    %16 = tpu.matmul %14, %15, %cst_13 {dimension_numbers = #tpu.dot_dimension_numbers<[1], [0], [0], [1], [0, 0, 1, 1], [], []>} : vector<256x128xbf16>, vector<128x128xbf16>, vector<256x128xf32> -> vector<256x128xf32>
    %17 = arith.truncf %16 : vector<256x128xf32> to vector<256x128xbf16>
    %cst_14 = arith.constant dense<0.000000e+00> : vector<256x128xf32>
    %18 = tpu.matmul %3, %17, %cst_14 {dimension_numbers = #tpu.dot_dimension_numbers<[1], [0], [0], [1], [0, 0, 1, 1], [], []>} : vector<256x256xbf16>, vector<256x128xbf16>, vector<256x128xf32> -> vector<256x128xf32>
    %c0_15 = arith.constant 0 : index
    %c0_16 = arith.constant 0 : index
    %19 = vector.load %arg6[%c0_15, %c0_16] : memref<1x128xf32, #tpu.memory_space<vmem>>, vector<1x128xf32>
    %20 = vector.broadcast %19 : vector<1x128xf32> to vector<256x128xf32>
    %21 = arith.addf %18, %20 : vector<256x128xf32>
    %22 = arith.truncf %21 : vector<256x128xf32> to vector<256x128xbf16>
    %c0_17 = arith.constant 0 : index
    %c0_18 = arith.constant 0 : index
    %23 = vector.load %arg7[%c0_17, %c0_18] : memref<128x128xbf16, #tpu.memory_space<vmem>>, vector<128x128xbf16>
    %cst_19 = arith.constant dense<0.000000e+00> : vector<256x128xf32>
    %24 = tpu.matmul %22, %23, %cst_19 {dimension_numbers = #tpu.dot_dimension_numbers<[1], [0], [0], [1], [0, 0, 1, 1], [], []>} : vector<256x128xbf16>, vector<128x128xbf16>, vector<256x128xf32> -> vector<256x128xf32>
    %25 = arith.truncf %24 : vector<256x128xf32> to vector<256x128xbf16>
    %cst_20 = arith.constant dense<0.000000e+00> : vector<256x128xf32>
    %26 = tpu.matmul %3, %25, %cst_20 {dimension_numbers = #tpu.dot_dimension_numbers<[1], [0], [0], [1], [0, 0, 1, 1], [], []>} : vector<256x256xbf16>, vector<256x128xbf16>, vector<256x128xf32> -> vector<256x128xf32>
    %c0_21 = arith.constant 0 : index
    %c0_22 = arith.constant 0 : index
    %27 = vector.load %arg8[%c0_21, %c0_22] : memref<1x128xf32, #tpu.memory_space<vmem>>, vector<1x128xf32>
    %28 = vector.broadcast %27 : vector<1x128xf32> to vector<256x128xf32>
    %29 = arith.addf %26, %28 : vector<256x128xf32>
    %c0_23 = arith.constant 0 : index
    %c0_24 = arith.constant 0 : index
    %c0_25 = arith.constant 0 : index
    %30 = vector.load %arg9[%c0_23, %c0_24, %c0_25] : memref<1x256x128xf32, #tpu.memory_space<vmem>>, vector<1x256x128xf32>
    %31 = vector.shape_cast %30 : vector<1x256x128xf32> to vector<256x128xf32>
    %32 = vector.shape_cast %29 : vector<256x128xf32> to vector<1x256x128xf32>
    tpu.vector_store %arg9[%c0_23, %c0_24, %c0_25], %32 {strides = array<i32>} : memref<1x256x128xf32, #tpu.memory_space<vmem>>, vector<1x256x128xf32>,
    return
  }
  func.func @transform_0(%arg0: i32) -> (i32, i32, i32) {
    %c0_i32 = arith.constant 0 : i32
    %c0_i32_0 = arith.constant 0 : i32
    %c0_i32_1 = arith.constant 0 : i32
    return %arg0, %c0_i32, %c0_i32_0 : i32, i32, i32
  }
  func.func @transform_1(%arg0: i32) -> (i32, i32, i32) {
    %c0_i32 = arith.constant 0 : i32
    %c0_i32_0 = arith.constant 0 : i32
    %c0_i32_1 = arith.constant 0 : i32
    return %arg0, %c0_i32, %c0_i32_0 : i32, i32, i32
  }
  func.func @transform_2(%arg0: i32) -> (i32, i32) {
    %c0_i32 = arith.constant 0 : i32
    %c0_i32_0 = arith.constant 0 : i32
    %c0_i32_1 = arith.constant 0 : i32
    return %c0_i32, %c0_i32_0 : i32, i32
  }
  func.func @transform_3(%arg0: i32) -> (i32, i32) {
    %c0_i32 = arith.constant 0 : i32
    %c0_i32_0 = arith.constant 0 : i32
    %c0_i32_1 = arith.constant 0 : i32
    return %c0_i32, %c0_i32_0 : i32, i32
  }
  func.func @transform_4(%arg0: i32) -> (i32, i32) {
    %c0_i32 = arith.constant 0 : i32
    %c0_i32_0 = arith.constant 0 : i32
    %c0_i32_1 = arith.constant 0 : i32
    return %c0_i32, %c0_i32_0 : i32, i32
  }
  func.func @transform_5(%arg0: i32) -> (i32, i32) {
    %c0_i32 = arith.constant 0 : i32
    %c0_i32_0 = arith.constant 0 : i32
    %c0_i32_1 = arith.constant 0 : i32
    return %c0_i32, %c0_i32_0 : i32, i32
  }
  func.func @transform_6(%arg0: i32) -> (i32, i32) {
    %c0_i32 = arith.constant 0 : i32
    %c0_i32_0 = arith.constant 0 : i32
    %c0_i32_1 = arith.constant 0 : i32
    return %c0_i32, %c0_i32_0 : i32, i32
  }
  func.func @transform_7(%arg0: i32) -> (i32, i32) {
    %c0_i32 = arith.constant 0 : i32
    %c0_i32_0 = arith.constant 0 : i32
    %c0_i32_1 = arith.constant 0 : i32
    return %c0_i32, %c0_i32_0 : i32, i32
  }
  func.func @transform_8(%arg0: i32) -> (i32, i32, i32) {
    %c0_i32 = arith.constant 0 : i32
    %c0_i32_0 = arith.constant 0 : i32
    %c0_i32_1 = arith.constant 0 : i32
    return %arg0, %c0_i32, %c0_i32_0 : i32, i32, i32
  }
}

</mosaic_0001>

<llo_original>
// kernel: tpu_custom_call.1
$region0: #{tpu_custom_call.1}
  #allocation0 [shape = 'u32[]', space=smem, size = 0x4, offset = 0x4, fixed_abs, tag = 'smem constant byte address 0x4 - core index']
  #allocation1 [shape = 'u32[144,128]{1,0:T(1,128)}', space=vmem, size = 0x12000, scoped, tag = 'internal scratch']
  %s0 = inlined_call_operand.vmem [shape: bf16[2,256,32], index: 0, kind: input, shape index: {}]
  %s1 = inlined_call_operand.hbm [shape: bf16[2,256,256], index: 1, kind: input, shape index: {}]
  %s2 = inlined_call_operand.vmem [shape: bf16[32,128], index: 2, kind: input, shape index: {}]
  %s3 = inlined_call_operand.vmem [shape: f32[1,128], index: 3, kind: input, shape index: {}]
  %s4 = inlined_call_operand.vmem [shape: bf16[128,128], index: 4, kind: input, shape index: {}]
  %s5 = inlined_call_operand.vmem [shape: f32[1,128], index: 5, kind: input, shape index: {}]
  %s6 = inlined_call_operand.vmem [shape: bf16[128,128], index: 6, kind: input, shape index: {}]
  %s7 = inlined_call_operand.vmem [shape: f32[1,128], index: 7, kind: input, shape index: {}]
  %s8 = inlined_call_operand.hbm [shape: f32[2,256,128], index: 8, kind: output, shape index: {}]
  %s9 = sld [smem:[#allocation0]]
  $region69: #{tpu_custom_call.1} parent=0
    _
  %s11 = ssub.s32 1, %s9
  %s12 = scalar_select 0, %s11, %s9
  $region1: #{tpu_custom_call.1} parent=0
    #allocation2 [shape = 'u8[262144]{0}', space=vmem, size = 0x40000, scoped, tag = 'input window, operand 1']
    #allocation3 [shape = 's32[2]{0}', space=sflag, size = 0x8, scoped, tag = 'scoped memory for tpu_custom_call.1']
    #allocation4 [shape = 's32[2]{0}', space=sflag, size = 0x8, scoped, tag = 'scoped memory for tpu_custom_call.1']
    #allocation5 [shape = 'u8[262144]{0}', space=vmem, size = 0x40000, scoped, tag = 'output window, operand 0']
    %13 = vsyncpa [#allocation3], 0
    %s14 = scalar_lea.sflag [#allocation3], 1
    %15 = vsyncpa %s14, 0
    %16 = vsyncpa [#allocation4], 0
    %s17 = scalar_lea.sflag [#allocation4], 1
    %18 = vsyncpa %s17, 0
    loop: start=0, step=1, limit=4
    $region2: #{tpu_custom_call.1} parent=1 // loop_pre_header
      _
    $region3: #{tpu_custom_call.1} parent=1 // loop_header
      %s20 = sphi 0, %s24
      %p21 = scmp.ge.s32.totalorder %s20, 4
      %s30 = sphi 0, %s32
      %s33 = sphi 0, %s30
      %s34 = sphi 0, %s33
      %s50 = sphi 0, %s34
      %s56 = sphi 0, %s58
      %s59 = sphi 0, %s56
      %s60 = sphi 0, %s59
      %s76 = sphi 0, %s60
      %s80 = sphi 0, %s80
      %s82 = sphi 0, %s80
      %s83 = sphi 0, %s82
      %s97 = sphi 0, %s83
      %s101 = sphi 0, %s101
      %s103 = sphi 0, %s101
      %s104 = sphi 0, %s103
      %s118 = sphi 0, %s104
      %s122 = sphi 0, %s122
      %s124 = sphi 0, %s122
      %s125 = sphi 0, %s124
      %s139 = sphi 0, %s125
      %s143 = sphi 0, %s143
      %s145 = sphi 0, %s143
      %s146 = sphi 0, %s145
      %s160 = sphi 0, %s146
      %s164 = sphi 0, %s164
      %s166 = sphi 0, %s164
      %s167 = sphi 0, %s166
      %s181 = sphi 0, %s167
      %s185 = sphi 0, %s185
      %s187 = sphi 0, %s185
      %s188 = sphi 0, %s187
      %s202 = sphi 0, %s188
      %s208 = sphi 0, %s210
      %s211 = sphi 0, %s208
      %s212 = sphi 0, %s211
      %s228 = sphi 0, %s212
    $region4: #{tpu_custom_call.1} parent=1 // loop_header_branch
      %23 = sbr.rel (%p21) target = $region8
    $region5: #{tpu_custom_call.1} parent=1 // loop_body
      %s25 = ssub.s32 %s20, 1
      %s26 = ssub.s32 %s20, 2
      %s27 = sadd.s32 %s20, 1
      %s28 = ssub.s32 %s20, %s27
      %p29 = scmp.eq.s32.totalorder %s28, 0
      %s31 = sadd.s32 %s30, 1
      %s32 = scalar_select %p29, %s30, %s31
      %p35 = pneg %p29
      %p36 = scmp.eq.s32.totalorder %s20, 1
      %p37 = por %p35, %p36
      %p38 = scmp.ne.s32.totalorder %s30, %s33
      %p39 = scmp.eq.s32.totalorder %s20, 0
      %p40 = por %p38, %p39
      %p41 = scmp.ne.s32.totalorder %s30, %s33
      %p42 = scmp.eq.s32.totalorder %s25, 1
      %p43 = por %p41, %p42
      %p44 = scmp.ne.s32.totalorder %s33, %s34
      %p45 = scmp.eq.s32.totalorder %s25, 0
      %p46 = por %p44, %p45
      %p47 = scmp.ne.s32.totalorder %s33, %s34
      %p48 = scmp.eq.s32.totalorder %s26, 1
      %p49 = por %p47, %p48
      %p51 = scmp.ne.s32.totalorder %s34, %s50
      %p52 = scmp.eq.s32.totalorder %s26, 0
      %p53 = por %p51, %p52
      %s54 = ssub.s32 %s20, %s27
      %p55 = scmp.eq.s32.totalorder %s54, 0
      %s57 = sadd.s32 %s56, 1
      %s58 = scalar_select %p55, %s56, %s57
      %p61 = pneg %p55
      %p62 = scmp.eq.s32.totalorder %s20, 1
      %p63 = por %p61, %p62
      %p64 = scmp.ne.s32.totalorder %s56, %s59
      %p65 = scmp.eq.s32.totalorder %s20, 0
      %p66 = por %p64, %p65
      %p67 = scmp.ne.s32.totalorder %s56, %s59
      %p68 = scmp.eq.s32.totalorder %s25, 1
      %p69 = por %p67, %p68
      %p70 = scmp.ne.s32.totalorder %s59, %s60
      %p71 = scmp.eq.s32.totalorder %s25, 0
      %p72 = por %p70, %p71
      %p73 = scmp.ne.s32.totalorder %s59, %s60
      %p74 = scmp.eq.s32.totalorder %s26, 1
      %p75 = por %p73, %p74
      %p77 = scmp.ne.s32.totalorder %s60, %s76
      %p78 = scmp.eq.s32.totalorder %s26, 0
      %p79 = por %p77, %p78
      %s81 = sadd.s32 %s80, 1
      %p84 = scmp.eq.s32.totalorder %s20, 1
      %p85 = scmp.ne.s32.totalorder %s80, %s82
      %p86 = scmp.eq.s32.totalorder %s20, 0
      %p87 = por %p85, %p86
      %p88 = scmp.ne.s32.totalorder %s80, %s82
      %p89 = scmp.eq.s32.totalorder %s25, 1
      %p90 = por %p88, %p89
      %p91 = scmp.ne.s32.totalorder %s82, %s83
      %p92 = scmp.eq.s32.totalorder %s25, 0
      %p93 = por %p91, %p92
      %p94 = scmp.ne.s32.totalorder %s82, %s83
      %p95 = scmp.eq.s32.totalorder %s26, 1
      %p96 = por %p94, %p95
      %p98 = scmp.ne.s32.totalorder %s83, %s97
      %p99 = scmp.eq.s32.totalorder %s26, 0
      %p100 = por %p98, %p99
      %s102 = sadd.s32 %s101, 1
      %p105 = scmp.eq.s32.totalorder %s20, 1
      %p106 = scmp.ne.s32.totalorder %s101, %s103
      %p107 = scmp.eq.s32.totalorder %s20, 0
      %p108 = por %p106, %p107
      %p109 = scmp.ne.s32.totalorder %s101, %s103
      %p110 = scmp.eq.s32.totalorder %s25, 1
      %p111 = por %p109, %p110
      %p112 = scmp.ne.s32.totalorder %s103, %s104
      %p113 = scmp.eq.s32.totalorder %s25, 0
      %p114 = por %p112, %p113
      %p115 = scmp.ne.s32.totalorder %s103, %s104
      %p116 = scmp.eq.s32.totalorder %s26, 1
      %p117 = por %p115, %p116
      %p119 = scmp.ne.s32.totalorder %s104, %s118
      %p120 = scmp.eq.s32.totalorder %s26, 0
      %p121 = por %p119, %p120
      %s123 = sadd.s32 %s122, 1
      %p126 = scmp.eq.s32.totalorder %s20, 1
      %p127 = scmp.ne.s32.totalorder %s122, %s124
      %p128 = scmp.eq.s32.totalorder %s20, 0
      %p129 = por %p127, %p128
      %p130 = scmp.ne.s32.totalorder %s122, %s124
      %p131 = scmp.eq.s32.totalorder %s25, 1
      %p132 = por %p130, %p131
      %p133 = scmp.ne.s32.totalorder %s124, %s125
      %p134 = scmp.eq.s32.totalorder %s25, 0
      %p135 = por %p133, %p134
      %p136 = scmp.ne.s32.totalorder %s124, %s125
      %p137 = scmp.eq.s32.totalorder %s26, 1
      %p138 = por %p136, %p137
      %p140 = scmp.ne.s32.totalorder %s125, %s139
      %p141 = scmp.eq.s32.totalorder %s26, 0
      %p142 = por %p140, %p141
      %s144 = sadd.s32 %s143, 1
      %p147 = scmp.eq.s32.totalorder %s20, 1
      %p148 = scmp.ne.s32.totalorder %s143, %s145
      %p149 = scmp.eq.s32.totalorder %s20, 0
      %p150 = por %p148, %p149
      %p151 = scmp.ne.s32.totalorder %s143, %s145
      %p152 = scmp.eq.s32.totalorder %s25, 1
      %p153 = por %p151, %p152
      %p154 = scmp.ne.s32.totalorder %s145, %s146
      %p155 = scmp.eq.s32.totalorder %s25, 0
      %p156 = por %p154, %p155
      %p157 = scmp.ne.s32.totalorder %s145, %s146
      %p158 = scmp.eq.s32.totalorder %s26, 1
      %p159 = por %p157, %p158
      %p161 = scmp.ne.s32.totalorder %s146, %s160
      %p162 = scmp.eq.s32.totalorder %s26, 0
      %p163 = por %p161, %p162
      %s165 = sadd.s32 %s164, 1
      %p168 = scmp.eq.s32.totalorder %s20, 1
      %p169 = scmp.ne.s32.totalorder %s164, %s166
      %p170 = scmp.eq.s32.totalorder %s20, 0
      %p171 = por %p169, %p170
      %p172 = scmp.ne.s32.totalorder %s164, %s166
      %p173 = scmp.eq.s32.totalorder %s25, 1
      %p174 = por %p172, %p173
      %p175 = scmp.ne.s32.totalorder %s166, %s167
      %p176 = scmp.eq.s32.totalorder %s25, 0
      %p177 = por %p175, %p176
      %p178 = scmp.ne.s32.totalorder %s166, %s167
      %p179 = scmp.eq.s32.totalorder %s26, 1
      %p180 = por %p178, %p179
      %p182 = scmp.ne.s32.totalorder %s167, %s181
      %p183 = scmp.eq.s32.totalorder %s26, 0
      %p184 = por %p182, %p183
      %s186 = sadd.s32 %s185, 1
      %p189 = scmp.eq.s32.totalorder %s20, 1
      %p190 = scmp.ne.s32.totalorder %s185, %s187
      %p191 = scmp.eq.s32.totalorder %s20, 0
      %p192 = por %p190, %p191
      %p193 = scmp.ne.s32.totalorder %s185, %s187
      %p194 = scmp.eq.s32.totalorder %s25, 1
      %p195 = por %p193, %p194
      %p196 = scmp.ne.s32.totalorder %s187, %s188
      %p197 = scmp.eq.s32.totalorder %s25, 0
      %p198 = por %p196, %p197
      %p199 = scmp.ne.s32.totalorder %s187, %s188
      %p200 = scmp.eq.s32.totalorder %s26, 1
      %p201 = por %p199, %p200
      %p203 = scmp.ne.s32.totalorder %s188, %s202
      %p204 = scmp.eq.s32.totalorder %s26, 0
      %p205 = por %p203, %p204
      %s206 = ssub.s32 %s20, %s27
      %p207 = scmp.eq.s32.totalorder %s206, 0
      %s209 = sadd.s32 %s208, 1
      %s210 = scalar_select %p207, %s208, %s209
      %p213 = pneg %p207
      %p214 = scmp.eq.s32.totalorder %s20, 1
      %p215 = por %p213, %p214
      %p216 = scmp.ne.s32.totalorder %s208, %s211
      %p217 = scmp.eq.s32.totalorder %s20, 0
      %p218 = por %p216, %p217
      %p219 = scmp.ne.s32.totalorder %s208, %s211
      %p220 = scmp.eq.s32.totalorder %s25, 1
      %p221 = por %p219, %p220
      %p222 = scmp.ne.s32.totalorder %s211, %s212
      %p223 = scmp.eq.s32.totalorder %s25, 0
      %p224 = por %p222, %p223
      %p225 = scmp.ne.s32.totalorder %s211, %s212
      %p226 = scmp.eq.s32.totalorder %s26, 1
      %p227 = por %p225, %p226
      %p229 = scmp.ne.s32.totalorder %s212, %s228
      %p230 = scmp.eq.s32.totalorder %s26, 0
      %p231 = por %p229, %p230
      %p232 = scmp.le.s32.totalorder 1, %s20
      %p233 = scmp.lt.s32.totalorder %s20, 3
      %p234 = pnand %p232, %p233
      %p235 = pneg %p234
      // Predicated region
      $region9: #{tpu_custom_call.1} parent=5 // pred_check
        _
      $region10: #{tpu_custom_call.1} parent=5 // pred_check_branch
        %237 = sbr.rel (%p234) target = $region12
      $region11: #{tpu_custom_call.1} parent=5 // pred_region
        %s238 = ssub.s32 %s20, 1
        // Predicated region
        $region13: #{tpu_custom_call.1} parent=11 // pred_check
          %p239 = pneg %p93
        $region14: #{tpu_custom_call.1} parent=11 // pred_check_branch
          %241 = sbr.rel (%p239) target = $region16
        $region15: #{tpu_custom_call.1} parent=11 // pred_region
          _
        $region16: #{tpu_custom_call.1} parent=11 // pred_fallthru
          _
        // Predicated region
        $region17: #{tpu_custom_call.1} parent=11 // pred_check
          %p242 = pneg %p114
        $region18: #{tpu_custom_call.1} parent=11 // pred_check_branch
          %244 = sbr.rel (%p242) target = $region20
        $region19: #{tpu_custom_call.1} parent=11 // pred_region
          _
        $region20: #{tpu_custom_call.1} parent=11 // pred_fallthru
          _
        // Predicated region
        $region21: #{tpu_custom_call.1} parent=11 // pred_check
          %p245 = pneg %p135
        $region22: #{tpu_custom_call.1} parent=11 // pred_check_branch
          %247 = sbr.rel (%p245) target = $region24
        $region23: #{tpu_custom_call.1} parent=11 // pred_region
          _
        $region24: #{tpu_custom_call.1} parent=11 // pred_fallthru
          _
        // Predicated region
        $region25: #{tpu_custom_call.1} parent=11 // pred_check
          %p248 = pneg %p156
        $region26: #{tpu_custom_call.1} parent=11 // pred_check_branch
          %250 = sbr.rel (%p248) target = $region28
        $region27: #{tpu_custom_call.1} parent=11 // pred_region
          _
        $region28: #{tpu_custom_call.1} parent=11 // pred_fallthru
          _
        // Predicated region
        $region29: #{tpu_custom_call.1} parent=11 // pred_check
          %p251 = pneg %p177
        $region30: #{tpu_custom_call.1} parent=11 // pred_check_branch
          %253 = sbr.rel (%p251) target = $region32
        $region31: #{tpu_custom_call.1} parent=11 // pred_region
          _
        $region32: #{tpu_custom_call.1} parent=11 // pred_fallthru
          _
        // Predicated region
        $region33: #{tpu_custom_call.1} parent=11 // pred_check
          %p254 = pneg %p198
        $region34: #{tpu_custom_call.1} parent=11 // pred_check_branch
          %256 = sbr.rel (%p254) target = $region36
        $region35: #{tpu_custom_call.1} parent=11 // pred_region
          _
        $region36: #{tpu_custom_call.1} parent=11 // pred_fallthru
          _
      $region12: #{tpu_custom_call.1} parent=5 // pred_fallthru
        _
      %p257 = scmp.lt.s32.totalorder %s20, 2
      // Predicated region
      $region37: #{tpu_custom_call.1} parent=5 // pred_check
        %p258 = pneg %p257
      $region38: #{tpu_custom_call.1} parent=5 // pred_check_branch
        %260 = sbr.rel (%p258) target = $region40
      $region39: #{tpu_custom_call.1} parent=5 // pred_region
        // Predicated region
        $region41: #{tpu_custom_call.1} parent=39 // pred_check
          %p261 = pneg %p40
        $region42: #{tpu_custom_call.1} parent=39 // pred_check_branch
          %263 = sbr.rel (%p261) target = $region44
        $region43: #{tpu_custom_call.1} parent=39 // pred_region
          %p264 = scmp.lt.s32.totalorder %s20, 1
          %s265 = scalar_select %p264, %s20, 1
          %s266 = smul.addr %s265, 32
          %s267 = smul.addr %s266, 4
          %s268 = scalar_lea.vmem %s0, %s267
        $region44: #{tpu_custom_call.1} parent=39 // pred_fallthru
          _
        // Predicated region
        $region45: #{tpu_custom_call.1} parent=39 // pred_check
          %p269 = pneg %p66
        $region46: #{tpu_custom_call.1} parent=39 // pred_check_branch
          %271 = sbr.rel (%p269) target = $region48
        $region47: #{tpu_custom_call.1} parent=39 // pred_region
          %s272 = sand.u32 %s56, 1
          %s273 = scalar_lea.sflag [#allocation3], %s272
          %s274 = sand.u32 %s56, 1
          %s275 = smul.addr %s274, 256
          %s276 = scalar_lea.vmem [#allocation2], %s275
          %s278 = ssub.s32 4096, 4096
          %279 = vsyncadd %s273, %s278
          %s280 = smul.addr %s20, 64
          %s281 = smul.addr %s280, 64
          %s282 = scalar_lea.hbm %s1, %s281
          %s283 = sshll.u32 %s276, 4
          %s284 = int_to_ptr.vmem [resolvable:$true] %s283
          %289 = dma.hbm_to_vmem [thread:$0]  %s282, 4096, %s284, %s273, 128, 128, 8
        $region48: #{tpu_custom_call.1} parent=39 // pred_fallthru
          _
      $region40: #{tpu_custom_call.1} parent=5 // pred_fallthru
        _
      %p290 = scmp.le.s32.totalorder 1, %s20
      %p291 = scmp.lt.s32.totalorder %s20, 3
      %p292 = pnand %p290, %p291
      %p293 = pneg %p292
      // Predicated region
      $region49: #{tpu_custom_call.1} parent=5 // pred_check
        _
      $region50: #{tpu_custom_call.1} parent=5 // pred_check_branch
        %295 = sbr.rel (%p292) target = $region52
      $region51: #{tpu_custom_call.1} parent=5 // pred_region
        %s296 = ssub.s32 %s20, 1
        %s297 = sand.u32 %s59, 1
        %s298 = scalar_lea.sflag [#allocation3], %s297
        %s299 = sand.u32 %s59, 1
        %s300 = smul.addr %s299, 256
        %s301 = scalar_lea.vmem [#allocation2], %s300
        // Predicated region
        $region53: #{tpu_custom_call.1} parent=51 // pred_check
          %p302 = pneg %p72
        $region54: #{tpu_custom_call.1} parent=51 // pred_check_branch
          %304 = sbr.rel (%p302) target = $region56
        $region55: #{tpu_custom_call.1} parent=51 // pred_region
          %305 = dma.done %s298, 4096
        $region56: #{tpu_custom_call.1} parent=51 // pred_fallthru
          _
        %p306 = scmp.lt.s32.totalorder %s25, 1
        %s307 = scalar_select %p306, %s25, 1
        %s308 = smul.addr %s307, 32
        %s309 = smul.addr %s308, 4
        %s310 = scalar_lea.vmem %s0, %s309
        %p311 = pneg %p46
        %p312 = pneg %p43
        %s313 = sand.u32 %s59, 1
        %s314 = scalar_lea.sflag [#allocation3], %s313
        %s315 = sand.u32 %s59, 1
        %s316 = smul.addr %s315, 256
        %s317 = scalar_lea.vmem [#allocation2], %s316
        %p318 = pneg %p72
        %p319 = pneg %p69
        %p320 = pneg %p93
        %p321 = pneg %p90
        %p322 = pneg %p114
        %p323 = pneg %p111
        %p324 = pneg %p135
        %p325 = pneg %p132
        %p326 = pneg %p156
        %p327 = pneg %p153
        %p328 = pneg %p177
        %p329 = pneg %p174
        %p330 = pneg %p198
        %p331 = pneg %p195
        %p332 = pneg %p224
        %p333 = pneg %p221
        %s334 = sand.u32 %s211, 1
        %s335 = scalar_lea.sflag [#allocation4], %s334
        %s336 = sand.u32 %s211, 1
        %s337 = smul.addr %s336, 256
        %s338 = scalar_lea.vmem [#allocation5], %s337
        %p339 = scmp.lt.s32.totalorder %s25, 1
        %s340 = scalar_select %p339, %s25, 1
        %s341 = smul.addr %s340, 32
        %s342 = smul.addr %s341, 4
        %s343 = scalar_lea.vmem %s0, %s342
        %v345 = vld [vmem:[%s343] sm:$0xf]
        %v346 = vld [vmem:[%s343 + $0x4] sm:$0xf]
        %v347 = vld [vmem:[%s343 + $0x8] sm:$0xf]
        %v348 = vld [vmem:[%s343 + $0xc] sm:$0xf]
        %v349 = vld [vmem:[%s343 + $0x10] sm:$0xf]
        %v350 = vld [vmem:[%s343 + $0x14] sm:$0xf]
        %v351 = vld [vmem:[%s343 + $0x18] sm:$0xf]
        %v352 = vld [vmem:[%s343 + $0x1c] sm:$0xf]
        %v353 = vld [vmem:[%s343 + $0x20] sm:$0xf]
        %v354 = vld [vmem:[%s343 + $0x24] sm:$0xf]
        %v355 = vld [vmem:[%s343 + $0x28] sm:$0xf]
        %v356 = vld [vmem:[%s343 + $0x2c] sm:$0xf]
        %v357 = vld [vmem:[%s343 + $0x30] sm:$0xf]
        %v358 = vld [vmem:[%s343 + $0x34] sm:$0xf]
        %v359 = vld [vmem:[%s343 + $0x38] sm:$0xf]
        %v360 = vld [vmem:[%s343 + $0x3c] sm:$0xf]
        %v361 = vld [vmem:[%s343 + $0x40] sm:$0xf]
        %v362 = vld [vmem:[%s343 + $0x44] sm:$0xf]
        %v363 = vld [vmem:[%s343 + $0x48] sm:$0xf]
        %v364 = vld [vmem:[%s343 + $0x4c] sm:$0xf]
        %v365 = vld [vmem:[%s343 + $0x50] sm:$0xf]
        %v366 = vld [vmem:[%s343 + $0x54] sm:$0xf]
        %v367 = vld [vmem:[%s343 + $0x58] sm:$0xf]
        %v368 = vld [vmem:[%s343 + $0x5c] sm:$0xf]
        %v369 = vld [vmem:[%s343 + $0x60] sm:$0xf]
        %v370 = vld [vmem:[%s343 + $0x64] sm:$0xf]
        %v371 = vld [vmem:[%s343 + $0x68] sm:$0xf]
        %v372 = vld [vmem:[%s343 + $0x6c] sm:$0xf]
        %v373 = vld [vmem:[%s343 + $0x70] sm:$0xf]
        %v374 = vld [vmem:[%s343 + $0x74] sm:$0xf]
        %v375 = vld [vmem:[%s343 + $0x78] sm:$0xf]
        %v376 = vld [vmem:[%s343 + $0x7c] sm:$0xf]
        %v377 = vld [vmem:[%s301] sm:$0xff]
        %v378 = vld [vmem:[%s301 + $0x8] sm:$0xff]
        %v379 = vld [vmem:[%s301 + $0x10] sm:$0xff]
        %v380 = vld [vmem:[%s301 + $0x18] sm:$0xff]
        %v381 = vld [vmem:[%s301 + $0x20] sm:$0xff]
        %v382 = vld [vmem:[%s301 + $0x28] sm:$0xff]
        %v383 = vld [vmem:[%s301 + $0x30] sm:$0xff]
        %v384 = vld [vmem:[%s301 + $0x38] sm:$0xff]
        %v385 = vld [vmem:[%s301 + $0x40] sm:$0xff]
        %v386 = vld [vmem:[%s301 + $0x48] sm:$0xff]
        %v387 = vld [vmem:[%s301 + $0x50] sm:$0xff]
        %v388 = vld [vmem:[%s301 + $0x58] sm:$0xff]
        %v389 = vld [vmem:[%s301 + $0x60] sm:$0xff]
        %v390 = vld [vmem:[%s301 + $0x68] sm:$0xff]
        %v391 = vld [vmem:[%s301 + $0x70] sm:$0xff]
        %v392 = vld [vmem:[%s301 + $0x78] sm:$0xff]
        %v393 = vld [vmem:[%s301 + $0x80] sm:$0xff]
        %v394 = vld [vmem:[%s301 + $0x88] sm:$0xff]
        %v395 = vld [vmem:[%s301 + $0x90] sm:$0xff]
        %v396 = vld [vmem:[%s301 + $0x98] sm:$0xff]
        %v397 = vld [vmem:[%s301 + $0xa0] sm:$0xff]
        %v398 = vld [vmem:[%s301 + $0xa8] sm:$0xff]
        %v399 = vld [vmem:[%s301 + $0xb0] sm:$0xff]
        %v400 = vld [vmem:[%s301 + $0xb8] sm:$0xff]
        %v401 = vld [vmem:[%s301 + $0xc0] sm:$0xff]
        %v402 = vld [vmem:[%s301 + $0xc8] sm:$0xff]
        %v403 = vld [vmem:[%s301 + $0xd0] sm:$0xff]
        %v404 = vld [vmem:[%s301 + $0xd8] sm:$0xff]
        %v405 = vld [vmem:[%s301 + $0xe0] sm:$0xff]
        %v406 = vld [vmem:[%s301 + $0xe8] sm:$0xff]
        %v407 = vld [vmem:[%s301 + $0xf0] sm:$0xff]
        %v408 = vld [vmem:[%s301 + $0xf8] sm:$0xff]
        %v409 = vld [vmem:[%s2] sm:$0xf]
        %v410 = vld [vmem:[%s2 + $0x4] sm:$0xf]
        %v411 = vld [vmem:[%s2 + $0x8] sm:$0xf]
        %v412 = vld [vmem:[%s2 + $0xc] sm:$0xf]
        %v413 = vld [vmem:[%s3] sm:$0x1]
        %v415 = vlaneseq
        %v416 = vshrl.u32 %v415, 7
        %v417 = vsub.s32 0, %v416
        %v418 = vrot.slane %v413, %v417
        %v452 = vunpack.c.l.b16 %v345
        %v453 = vunpack.c.l.b16 %v346
        %v454 = vunpack.c.l.b16 %v347
        %v455 = vunpack.c.l.b16 %v348
        %v456 = vunpack.c.l.b16 %v349
        %v457 = vunpack.c.l.b16 %v350
        %v458 = vunpack.c.l.b16 %v351
        %v459 = vunpack.c.l.b16 %v352
        %v460 = vunpack.c.l.b16 %v353
        %v461 = vunpack.c.l.b16 %v354
        %v462 = vunpack.c.l.b16 %v355
        %v463 = vunpack.c.l.b16 %v356
        %v464 = vunpack.c.l.b16 %v357
        %v465 = vunpack.c.l.b16 %v358
        %v466 = vunpack.c.l.b16 %v359
        %v467 = vunpack.c.l.b16 %v360
        %v468 = vunpack.c.l.b16 %v361
        %v469 = vunpack.c.l.b16 %v362
        %v470 = vunpack.c.l.b16 %v363
        %v471 = vunpack.c.l.b16 %v364
        %v472 = vunpack.c.l.b16 %v365
        %v473 = vunpack.c.l.b16 %v366
        %v474 = vunpack.c.l.b16 %v367
        %v475 = vunpack.c.l.b16 %v368
        %v476 = vunpack.c.l.b16 %v369
        %v477 = vunpack.c.l.b16 %v370
        %v478 = vunpack.c.l.b16 %v371
        %v479 = vunpack.c.l.b16 %v372
        %v480 = vunpack.c.l.b16 %v373
        %v481 = vunpack.c.l.b16 %v374
        %v482 = vunpack.c.l.b16 %v375
        %v483 = vunpack.c.l.b16 %v376
        %v484 = vpack.c.b16 %v453, %v452
        %v485 = vpack.c.b16 %v455, %v454
        %v486 = vpack.c.b16 %v457, %v456
        %v487 = vpack.c.b16 %v459, %v458
        %v488 = vpack.c.b16 %v461, %v460
        %v489 = vpack.c.b16 %v463, %v462
        %v490 = vpack.c.b16 %v465, %v464
        %v491 = vpack.c.b16 %v467, %v466
        %v492 = vpack.c.b16 %v469, %v468
        %v493 = vpack.c.b16 %v471, %v470
        %v494 = vpack.c.b16 %v473, %v472
        %v495 = vpack.c.b16 %v475, %v474
        %v496 = vpack.c.b16 %v477, %v476
        %v497 = vpack.c.b16 %v479, %v478
        %v498 = vpack.c.b16 %v481, %v480
        %v499 = vpack.c.b16 %v483, %v482
        %v504 = vunpack.c.l.b16 %v409
        %v505 = vunpack.c.l.b16 %v410
        %v506 = vunpack.c.l.b16 %v411
        %v507 = vunpack.c.l.b16 %v412
        %v508 = vpack.c.b16 %v505, %v504
        %v509 = vpack.c.b16 %v507, %v506
        %vm512 = vcmask 261120
        %v514 = vsel %vm512, %v484, 0
        %v517 = vsel %vm512, %v485, 0
        %v520 = vsel %vm512, %v486, 0
        %v523 = vsel %vm512, %v487, 0
        %v526 = vsel %vm512, %v488, 0
        %v529 = vsel %vm512, %v489, 0
        %v532 = vsel %vm512, %v490, 0
        %v535 = vsel %vm512, %v491, 0
        %v538 = vsel %vm512, %v492, 0
        %v541 = vsel %vm512, %v493, 0
        %v544 = vsel %vm512, %v494, 0
        %v547 = vsel %vm512, %v495, 0
        %v550 = vsel %vm512, %v496, 0
        %v553 = vsel %vm512, %v497, 0
        %v556 = vsel %vm512, %v498, 0
        %v559 = vsel %vm512, %v499, 0
        %561 = vmatprep.subr.bf16.mxu0 0
        %562 = vmatpush1.bf16.msra.mxu0 %v508
        %563 = vmatprep.subr.bf16.mxu0 0
        %564 = vmatpush1.bf16.msra.mxu0 %v509
        %565 = vmatprep.subr.bf16.mxu0 0
        %566 = vmatpush1.bf16.msra.mxu0 0
        %567 = vmatprep.subr.bf16.mxu0 0
        %568 = vmatpush1.bf16.msra.mxu0 0
        %569 = vmatprep.subr.bf16.mxu0 0
        %570 = vmatpush1.bf16.msra.mxu0 0
        %571 = vmatprep.subr.bf16.mxu0 0
        %572 = vmatpush1.bf16.msra.mxu0 0
        %573 = vmatprep.subr.bf16.mxu0 0
        %574 = vmatpush1.bf16.msra.mxu0 0
        %575 = vmatprep.subr.bf16.mxu0 0
        %576 = vmatpush1.bf16.msra.mxu0 0
        %577 = vmatprep.subr.bf16.mxu0 0
        %578 = vmatpush1.bf16.msra.mxu0 0
        %579 = vmatprep.subr.bf16.mxu0 0
        %580 = vmatpush1.bf16.msra.mxu0 0
        %581 = vmatprep.subr.bf16.mxu0 0
        %582 = vmatpush1.bf16.msra.mxu0 0
        %583 = vmatprep.subr.bf16.mxu0 0
        %584 = vmatpush1.bf16.msra.mxu0 0
        %585 = vmatprep.subr.bf16.mxu0 0
        %586 = vmatpush1.bf16.msra.mxu0 0
        %587 = vmatprep.subr.bf16.mxu0 0
        %588 = vmatpush1.bf16.msra.mxu0 0
        %589 = vmatprep.subr.bf16.mxu0 0
        %590 = vmatpush1.bf16.msra.mxu0 0
        %591 = vmatprep.subr.bf16.mxu0 0
        %592 = vmatpush1.bf16.msra.mxu0 0
        %593 = vmatprep.mubr.bf16.mxu0 0
        %594 = vmatmul.mubr.bf16.gmra.mrb[0].mxu0 %v514
        %v595 = vpop.f32.mrb[0].mxu0
        %v596 = vadd.f32 %v418, %v595
        %v597 = vpop.f32.mrb[0].mxu0
        %v598 = vpop.f32.mrb[0].mxu0
        %v599 = vadd.f32 %v418, %v598
        %v600 = vpop.f32.mrb[0].mxu0
        %601 = vmatprep.mubr.bf16.mxu0 0
        %602 = vmatmul.mubr.bf16.gmra.mrb[0].mxu0 %v517
        %v603 = vpop.f32.mrb[0].mxu0
        %v604 = vadd.f32 %v418, %v603
        %v605 = vpop.f32.mrb[0].mxu0
        %v606 = vpop.f32.mrb[0].mxu0
        %v607 = vadd.f32 %v418, %v606
        %v608 = vpop.f32.mrb[0].mxu0
        %609 = vmatprep.mubr.bf16.mxu0 0
        %610 = vmatmul.mubr.bf16.gmra.mrb[0].mxu0 %v520
        %v611 = vpop.f32.mrb[0].mxu0
        %v612 = vadd.f32 %v418, %v611
        %v613 = vpop.f32.mrb[0].mxu0
        %v614 = vpop.f32.mrb[0].mxu0
        %v615 = vadd.f32 %v418, %v614
        %v616 = vpop.f32.mrb[0].mxu0
        %617 = vmatprep.mubr.bf16.mxu0 0
        %618 = vmatmul.mubr.bf16.gmra.mrb[0].mxu0 %v523
        %v619 = vpop.f32.mrb[0].mxu0
        %v620 = vadd.f32 %v418, %v619
        %v621 = vpop.f32.mrb[0].mxu0
        %v622 = vpop.f32.mrb[0].mxu0
        %v623 = vadd.f32 %v418, %v622
        %v624 = vpop.f32.mrb[0].mxu0
        %625 = vmatprep.mubr.bf16.mxu0 0
        %626 = vmatmul.mubr.bf16.gmra.mrb[0].mxu0 %v526
        %v627 = vpop.f32.mrb[0].mxu0
        %v628 = vadd.f32 %v418, %v627
        %v629 = vpop.f32.mrb[0].mxu0
        %v630 = vpop.f32.mrb[0].mxu0
        %v631 = vadd.f32 %v418, %v630
        %v632 = vpop.f32.mrb[0].mxu0
        %633 = vmatprep.mubr.bf16.mxu0 0
        %634 = vmatmul.mubr.bf16.gmra.mrb[0].mxu0 %v529
        %v635 = vpop.f32.mrb[0].mxu0
        %v636 = vadd.f32 %v418, %v635
        %v637 = vpop.f32.mrb[0].mxu0
        %v638 = vpop.f32.mrb[0].mxu0
        %v639 = vadd.f32 %v418, %v638
        %v640 = vpop.f32.mrb[0].mxu0
        %641 = vmatprep.mubr.bf16.mxu0 0
        %642 = vmatmul.mubr.bf16.gmra.mrb[0].mxu0 %v532
        %v643 = vpop.f32.mrb[0].mxu0
        %v644 = vadd.f32 %v418, %v643
        %v645 = vpop.f32.mrb[0].mxu0
        %v646 = vpop.f32.mrb[0].mxu0
        %v647 = vadd.f32 %v418, %v646
        %v648 = vpop.f32.mrb[0].mxu0
        %649 = vmatprep.mubr.bf16.mxu0 0
        %650 = vmatmul.mubr.bf16.gmra.mrb[0].mxu0 %v535
        %v651 = vpop.f32.mrb[0].mxu0
        %v652 = vadd.f32 %v418, %v651
        %v653 = vpop.f32.mrb[0].mxu0
        %v654 = vpop.f32.mrb[0].mxu0
        %v655 = vadd.f32 %v418, %v654
        %v656 = vpop.f32.mrb[0].mxu0
        %657 = vmatprep.mubr.bf16.mxu0 0
        %658 = vmatmul.mubr.bf16.gmra.mrb[0].mxu0 %v538
        %v659 = vpop.f32.mrb[0].mxu0
        %v660 = vadd.f32 %v418, %v659
        %v661 = vpop.f32.mrb[0].mxu0
        %v662 = vpop.f32.mrb[0].mxu0
        %v663 = vadd.f32 %v418, %v662
        %v664 = vpop.f32.mrb[0].mxu0
        %665 = vmatprep.mubr.bf16.mxu0 0
        %666 = vmatmul.mubr.bf16.gmra.mrb[0].mxu0 %v541
        %v667 = vpop.f32.mrb[0].mxu0
        %v668 = vadd.f32 %v418, %v667
        %v669 = vpop.f32.mrb[0].mxu0
        %v670 = vpop.f32.mrb[0].mxu0
        %v671 = vadd.f32 %v418, %v670
        %v672 = vpop.f32.mrb[0].mxu0
        %673 = vmatprep.mubr.bf16.mxu0 0
        %674 = vmatmul.mubr.bf16.gmra.mrb[0].mxu0 %v544
        %v675 = vpop.f32.mrb[0].mxu0
        %v676 = vadd.f32 %v418, %v675
        %v677 = vpop.f32.mrb[0].mxu0
        %v678 = vpop.f32.mrb[0].mxu0
        %v679 = vadd.f32 %v418, %v678
        %v680 = vpop.f32.mrb[0].mxu0
        %681 = vmatprep.mubr.bf16.mxu0 0
        %682 = vmatmul.mubr.bf16.gmra.mrb[0].mxu0 %v547
        %v683 = vpop.f32.mrb[0].mxu0
        %v684 = vadd.f32 %v418, %v683
        %v685 = vpop.f32.mrb[0].mxu0
        %v686 = vpop.f32.mrb[0].mxu0
        %v687 = vadd.f32 %v418, %v686
        %v688 = vpop.f32.mrb[0].mxu0
        %689 = vmatprep.mubr.bf16.mxu0 0
        %690 = vmatmul.mubr.bf16.gmra.mrb[0].mxu0 %v550
        %v691 = vpop.f32.mrb[0].mxu0
        %v692 = vadd.f32 %v418, %v691
        %v693 = vpop.f32.mrb[0].mxu0
        %v694 = vpop.f32.mrb[0].mxu0
        %v695 = vadd.f32 %v418, %v694
        %v696 = vpop.f32.mrb[0].mxu0
        %697 = vmatprep.mubr.bf16.mxu0 0
        %698 = vmatmul.mubr.bf16.gmra.mrb[0].mxu0 %v553
        %v699 = vpop.f32.mrb[0].mxu0
        %v700 = vadd.f32 %v418, %v699
        %v701 = vpop.f32.mrb[0].mxu0
        %v702 = vpop.f32.mrb[0].mxu0
        %v703 = vadd.f32 %v418, %v702
        %v704 = vpop.f32.mrb[0].mxu0
        %705 = vmatprep.mubr.bf16.mxu0 0
        %706 = vmatmul.mubr.bf16.gmra.mrb[0].mxu0 %v556
        %v707 = vpop.f32.mrb[0].mxu0
        %v708 = vadd.f32 %v418, %v707
        %v709 = vpop.f32.mrb[0].mxu0
        %v710 = vpop.f32.mrb[0].mxu0
        %v711 = vadd.f32 %v418, %v710
        %v712 = vpop.f32.mrb[0].mxu0
        %713 = vmatprep.mubr.bf16.mxu0 0
        %714 = vmatmul.mubr.bf16.gmra.mrb[0].mxu0 %v559
        %v715 = vpop.f32.mrb[0].mxu0
        %v716 = vadd.f32 %v418, %v715
        %v717 = vpop.f32.mrb[0].mxu0
        %v718 = vpop.f32.mrb[0].mxu0
        %v719 = vadd.f32 %v418, %v718
        %v720 = vpop.f32.mrb[0].mxu0
        %721 = vdwg.mxu0
        %vm722 = vcmp.gt.f32.partialorder %v596, 0.0
        %vm723 = vcmp.gt.f32.partialorder %v599, 0.0
        %vm724 = vcmp.gt.f32.partialorder %v604, 0.0
        %vm725 = vcmp.gt.f32.partialorder %v607, 0.0
        %vm726 = vcmp.gt.f32.partialorder %v612, 0.0
        %vm727 = vcmp.gt.f32.partialorder %v615, 0.0
        %vm728 = vcmp.gt.f32.partialorder %v620, 0.0
        %vm729 = vcmp.gt.f32.partialorder %v623, 0.0
        %vm730 = vcmp.gt.f32.partialorder %v628, 0.0
        %vm731 = vcmp.gt.f32.partialorder %v631, 0.0
        %vm732 = vcmp.gt.f32.partialorder %v636, 0.0
        %vm733 = vcmp.gt.f32.partialorder %v639, 0.0
        %vm734 = vcmp.gt.f32.partialorder %v644, 0.0
        %vm735 = vcmp.gt.f32.partialorder %v647, 0.0
        %vm736 = vcmp.gt.f32.partialorder %v652, 0.0
        %vm737 = vcmp.gt.f32.partialorder %v655, 0.0
        %vm738 = vcmp.gt.f32.partialorder %v660, 0.0
        %vm739 = vcmp.gt.f32.partialorder %v663, 0.0
        %vm740 = vcmp.gt.f32.partialorder %v668, 0.0
        %vm741 = vcmp.gt.f32.partialorder %v671, 0.0
        %vm742 = vcmp.gt.f32.partialorder %v676, 0.0
        %vm743 = vcmp.gt.f32.partialorder %v679, 0.0
        %vm744 = vcmp.gt.f32.partialorder %v684, 0.0
        %vm745 = vcmp.gt.f32.partialorder %v687, 0.0
        %vm746 = vcmp.gt.f32.partialorder %v692, 0.0
        %vm747 = vcmp.gt.f32.partialorder %v695, 0.0
        %vm748 = vcmp.gt.f32.partialorder %v700, 0.0
        %vm749 = vcmp.gt.f32.partialorder %v703, 0.0
        %vm750 = vcmp.gt.f32.partialorder %v708, 0.0
        %vm751 = vcmp.gt.f32.partialorder %v711, 0.0
        %vm752 = vcmp.gt.f32.partialorder %v716, 0.0
        %vm753 = vcmp.gt.f32.partialorder %v719, 0.0
        %v754 = vmul.f32 %v596, 0.01
        %v755 = vmul.f32 %v599, 0.01
        %v756 = vmul.f32 %v604, 0.01
        %v757 = vmul.f32 %v607, 0.01
        %v758 = vmul.f32 %v612, 0.01
        %v759 = vmul.f32 %v615, 0.01
        %v760 = vmul.f32 %v620, 0.01
        %v761 = vmul.f32 %v623, 0.01
        %v762 = vmul.f32 %v628, 0.01
        %v763 = vmul.f32 %v631, 0.01
        %v764 = vmul.f32 %v636, 0.01
        %v765 = vmul.f32 %v639, 0.01
        %v766 = vmul.f32 %v644, 0.01
        %v767 = vmul.f32 %v647, 0.01
        %v768 = vmul.f32 %v652, 0.01
        %v769 = vmul.f32 %v655, 0.01
        %v770 = vmul.f32 %v660, 0.01
        %v771 = vmul.f32 %v663, 0.01
        %v772 = vmul.f32 %v668, 0.01
        %v773 = vmul.f32 %v671, 0.01
        %v774 = vmul.f32 %v676, 0.01
        %v775 = vmul.f32 %v679, 0.01
        %v776 = vmul.f32 %v684, 0.01
        %v777 = vmul.f32 %v687, 0.01
        %v778 = vmul.f32 %v692, 0.01
        %v779 = vmul.f32 %v695, 0.01
        %v780 = vmul.f32 %v700, 0.01
        %v781 = vmul.f32 %v703, 0.01
        %v782 = vmul.f32 %v708, 0.01
        %v783 = vmul.f32 %v711, 0.01
        %v784 = vmul.f32 %v716, 0.01
        %v785 = vmul.f32 %v719, 0.01
        %v786 = vsel %vm722, %v596, %v754
        %v787 = vsel %vm723, %v599, %v755
        %v788 = vsel %vm724, %v604, %v756
        %v789 = vsel %vm725, %v607, %v757
        %v790 = vsel %vm726, %v612, %v758
        %v791 = vsel %vm727, %v615, %v759
        %v792 = vsel %vm728, %v620, %v760
        %v793 = vsel %vm729, %v623, %v761
        %v794 = vsel %vm730, %v628, %v762
        %v795 = vsel %vm731, %v631, %v763
        %v796 = vsel %vm732, %v636, %v764
        %v797 = vsel %vm733, %v639, %v765
        %v798 = vsel %vm734, %v644, %v766
        %v799 = vsel %vm735, %v647, %v767
        %v800 = vsel %vm736, %v652, %v768
        %v801 = vsel %vm737, %v655, %v769
        %v802 = vsel %vm738, %v660, %v770
        %v803 = vsel %vm739, %v663, %v771
        %v804 = vsel %vm740, %v668, %v772
        %v805 = vsel %vm741, %v671, %v773
        %v806 = vsel %vm742, %v676, %v774
        %v807 = vsel %vm743, %v679, %v775
        %v808 = vsel %vm744, %v684, %v776
        %v809 = vsel %vm745, %v687, %v777
        %v810 = vsel %vm746, %v692, %v778
        %v811 = vsel %vm747, %v695, %v779
        %v812 = vsel %vm748, %v700, %v780
        %v813 = vsel %vm749, %v703, %v781
        %v814 = vsel %vm750, %v708, %v782
        %v815 = vsel %vm751, %v711, %v783
        %v816 = vsel %vm752, %v716, %v784
        %v817 = vsel %vm753, %v719, %v785
        %v818 = vpack.c.bf16 %v787, %v786
        %v819 = vpack.c.bf16 %v789, %v788
        %v820 = vpack.c.bf16 %v791, %v790
        %v821 = vpack.c.bf16 %v793, %v792
        %v822 = vpack.c.bf16 %v795, %v794
        %v823 = vpack.c.bf16 %v797, %v796
        %v824 = vpack.c.bf16 %v799, %v798
        %v825 = vpack.c.bf16 %v801, %v800
        %v826 = vpack.c.bf16 %v803, %v802
        %v827 = vpack.c.bf16 %v805, %v804
        %v828 = vpack.c.bf16 %v807, %v806
        %v829 = vpack.c.bf16 %v809, %v808
        %v830 = vpack.c.bf16 %v811, %v810
        %v831 = vpack.c.bf16 %v813, %v812
        %v832 = vpack.c.bf16 %v815, %v814
        %v833 = vpack.c.bf16 %v817, %v816
        %v834 = vld [vmem:[%s4] sm:$0xf]
        %v835 = vld [vmem:[%s4 + $0x4] sm:$0xf]
        %v836 = vld [vmem:[%s4 + $0x8] sm:$0xf]
        %v837 = vld [vmem:[%s4 + $0xc] sm:$0xf]
        %v838 = vld [vmem:[%s4 + $0x10] sm:$0xf]
        %v839 = vld [vmem:[%s4 + $0x14] sm:$0xf]
        %v840 = vld [vmem:[%s4 + $0x18] sm:$0xf]
        %v841 = vld [vmem:[%s4 + $0x1c] sm:$0xf]
        %v842 = vld [vmem:[%s4 + $0x20] sm:$0xf]
        %v843 = vld [vmem:[%s4 + $0x24] sm:$0xf]
        %v844 = vld [vmem:[%s4 + $0x28] sm:$0xf]
        %v845 = vld [vmem:[%s4 + $0x2c] sm:$0xf]
        %v846 = vld [vmem:[%s4 + $0x30] sm:$0xf]
        %v847 = vld [vmem:[%s4 + $0x34] sm:$0xf]
        %v848 = vld [vmem:[%s4 + $0x38] sm:$0xf]
        %v849 = vld [vmem:[%s4 + $0x3c] sm:$0xf]
        %v866 = vunpack.c.l.b16 %v834
        %v867 = vunpack.c.l.b16 %v835
        %v868 = vunpack.c.l.b16 %v836
        %v869 = vunpack.c.l.b16 %v837
        %v870 = vunpack.c.l.b16 %v838
        %v871 = vunpack.c.l.b16 %v839
        %v872 = vunpack.c.l.b16 %v840
        %v873 = vunpack.c.l.b16 %v841
        %v874 = vunpack.c.l.b16 %v842
        %v875 = vunpack.c.l.b16 %v843
        %v876 = vunpack.c.l.b16 %v844
        %v877 = vunpack.c.l.b16 %v845
        %v878 = vunpack.c.l.b16 %v846
        %v879 = vunpack.c.l.b16 %v847
        %v880 = vunpack.c.l.b16 %v848
        %v881 = vunpack.c.l.b16 %v849
        %v882 = vpack.c.b16 %v867, %v866
        %v883 = vpack.c.b16 %v869, %v868
        %v884 = vpack.c.b16 %v871, %v870
        %v885 = vpack.c.b16 %v873, %v872
        %v886 = vpack.c.b16 %v875, %v874
        %v887 = vpack.c.b16 %v877, %v876
        %v888 = vpack.c.b16 %v879, %v878
        %v889 = vpack.c.b16 %v881, %v880
        %898 = vmatprep.subr.bf16.mxu0 0
        %899 = vmatpush1.bf16.msra.mxu0 %v882
        %900 = vmatprep.subr.bf16.mxu0 0
        %901 = vmatpush1.bf16.msra.mxu0 %v883
        %902 = vmatprep.subr.bf16.mxu0 0
        %903 = vmatpush1.bf16.msra.mxu0 %v884
        %904 = vmatprep.subr.bf16.mxu0 0
        %905 = vmatpush1.bf16.msra.mxu0 %v885
        %906 = vmatprep.subr.bf16.mxu0 0
        %907 = vmatpush1.bf16.msra.mxu0 %v886
        %908 = vmatprep.subr.bf16.mxu0 0
        %909 = vmatpush1.bf16.msra.mxu0 %v887
        %910 = vmatprep.subr.bf16.mxu0 0
        %911 = vmatpush1.bf16.msra.mxu0 %v888
        %912 = vmatprep.subr.bf16.mxu0 0
        %913 = vmatpush1.bf16.msra.mxu0 %v889
        %914 = vmatprep.subr.bf16.mxu0 0
        %915 = vmatpush1.bf16.msra.mxu0 0
        %916 = vmatprep.subr.bf16.mxu0 0
        %917 = vmatpush1.bf16.msra.mxu0 0
        %918 = vmatprep.subr.bf16.mxu0 0
        %919 = vmatpush1.bf16.msra.mxu0 0
        %920 = vmatprep.subr.bf16.mxu0 0
        %921 = vmatpush1.bf16.msra.mxu0 0
        %922 = vmatprep.subr.bf16.mxu0 0
        %923 = vmatpush1.bf16.msra.mxu0 0
        %924 = vmatprep.subr.bf16.mxu0 0
        %925 = vmatpush1.bf16.msra.mxu0 0
        %926 = vmatprep.subr.bf16.mxu0 0
        %927 = vmatpush1.bf16.msra.mxu0 0
        %928 = vmatprep.subr.bf16.mxu0 0
        %929 = vmatpush1.bf16.msra.mxu0 0
        %930 = vmatprep.mubr.bf16.mxu0 0
        %931 = vmatmul.mubr.bf16.gmra.mrb[0].mxu0 %v818
        %v932 = vpop.f32.mrb[0].mxu0
        %v933 = vadd.f32 0.0, %v932
        %v934 = vpop.f32.mrb[0].mxu0
        %v935 = vpop.f32.mrb[0].mxu0
        %v936 = vadd.f32 0.0, %v935
        %v937 = vpop.f32.mrb[0].mxu0
        %938 = vmatprep.mubr.bf16.mxu0 0
        %939 = vmatmul.mubr.bf16.gmra.mrb[0].mxu0 %v819
        %v940 = vpop.f32.mrb[0].mxu0
        %v941 = vadd.f32 0.0, %v940
        %v942 = vpop.f32.mrb[0].mxu0
        %v943 = vpop.f32.mrb[0].mxu0
        %v944 = vadd.f32 0.0, %v943
        %v945 = vpop.f32.mrb[0].mxu0
        %946 = vmatprep.mubr.bf16.mxu0 0
        %947 = vmatmul.mubr.bf16.gmra.mrb[0].mxu0 %v820
        %v948 = vpop.f32.mrb[0].mxu0
        %v949 = vadd.f32 0.0, %v948
        %v950 = vpop.f32.mrb[0].mxu0
        %v951 = vpop.f32.mrb[0].mxu0
        %v952 = vadd.f32 0.0, %v951
        %v953 = vpop.f32.mrb[0].mxu0
        %954 = vmatprep.mubr.bf16.mxu0 0
        %955 = vmatmul.mubr.bf16.gmra.mrb[0].mxu0 %v821
        %v956 = vpop.f32.mrb[0].mxu0
        %v957 = vadd.f32 0.0, %v956
        %v958 = vpop.f32.mrb[0].mxu0
        %v959 = vpop.f32.mrb[0].mxu0
        %v960 = vadd.f32 0.0, %v959
        %v961 = vpop.f32.mrb[0].mxu0
        %962 = vmatprep.mubr.bf16.mxu0 0
        %963 = vmatmul.mubr.bf16.gmra.mrb[0].mxu0 %v822
        %v964 = vpop.f32.mrb[0].mxu0
        %v965 = vadd.f32 0.0, %v964
        %v966 = vpop.f32.mrb[0].mxu0
        %v967 = vpop.f32.mrb[0].mxu0
        %v968 = vadd.f32 0.0, %v967
        %v969 = vpop.f32.mrb[0].mxu0
        %970 = vmatprep.mubr.bf16.mxu0 0
        %971 = vmatmul.mubr.bf16.gmra.mrb[0].mxu0 %v823
        %v972 = vpop.f32.mrb[0].mxu0
        %v973 = vadd.f32 0.0, %v972
        %v974 = vpop.f32.mrb[0].mxu0
        %v975 = vpop.f32.mrb[0].mxu0
        %v976 = vadd.f32 0.0, %v975
        %v977 = vpop.f32.mrb[0].mxu0
        %978 = vmatprep.mubr.bf16.mxu0 0
        %979 = vmatmul.mubr.bf16.gmra.mrb[0].mxu0 %v824
        %v980 = vpop.f32.mrb[0].mxu0
        %v981 = vadd.f32 0.0, %v980
        %v982 = vpop.f32.mrb[0].mxu0
        %v983 = vpop.f32.mrb[0].mxu0
        %v984 = vadd.f32 0.0, %v983
        %v985 = vpop.f32.mrb[0].mxu0
        %986 = vmatprep.mubr.bf16.mxu0 0
        %987 = vmatmul.mubr.bf16.gmra.mrb[0].mxu0 %v825
        %v988 = vpop.f32.mrb[0].mxu0
        %v989 = vadd.f32 0.0, %v988
        %v990 = vpop.f32.mrb[0].mxu0
        %v991 = vpop.f32.mrb[0].mxu0
        %v992 = vadd.f32 0.0, %v991
        %v993 = vpop.f32.mrb[0].mxu0
        %994 = vmatprep.mubr.bf16.mxu0 0
        %995 = vmatmul.mubr.bf16.gmra.mrb[0].mxu0 %v826
        %v996 = vpop.f32.mrb[0].mxu0
        %v997 = vadd.f32 0.0, %v996
        %v998 = vpop.f32.mrb[0].mxu0
        %v999 = vpop.f32.mrb[0].mxu0
        %v1000 = vadd.f32 0.0, %v999
        %v1001 = vpop.f32.mrb[0].mxu0
        %1002 = vmatprep.mubr.bf16.mxu0 0
        %1003 = vmatmul.mubr.bf16.gmra.mrb[0].mxu0 %v827
        %v1004 = vpop.f32.mrb[0].mxu0
        %v1005 = vadd.f32 0.0, %v1004
        %v1006 = vpop.f32.mrb[0].mxu0
        %v1007 = vpop.f32.mrb[0].mxu0
        %v1008 = vadd.f32 0.0, %v1007
        %v1009 = vpop.f32.mrb[0].mxu0
        %1010 = vmatprep.mubr.bf16.mxu0 0
        %1011 = vmatmul.mubr.bf16.gmra.mrb[0].mxu0 %v828
        %v1012 = vpop.f32.mrb[0].mxu0
        %v1013 = vadd.f32 0.0, %v1012
        %v1014 = vpop.f32.mrb[0].mxu0
        %v1015 = vpop.f32.mrb[0].mxu0
        %v1016 = vadd.f32 0.0, %v1015
        %v1017 = vpop.f32.mrb[0].mxu0
        %1018 = vmatprep.mubr.bf16.mxu0 0
        %1019 = vmatmul.mubr.bf16.gmra.mrb[0].mxu0 %v829
        %v1020 = vpop.f32.mrb[0].mxu0
        %v1021 = vadd.f32 0.0, %v1020
        %v1022 = vpop.f32.mrb[0].mxu0
        %v1023 = vpop.f32.mrb[0].mxu0
        %v1024 = vadd.f32 0.0, %v1023
        %v1025 = vpop.f32.mrb[0].mxu0
        %1026 = vmatprep.mubr.bf16.mxu0 0
        %1027 = vmatmul.mubr.bf16.gmra.mrb[0].mxu0 %v830
        %v1028 = vpop.f32.mrb[0].mxu0
        %v1029 = vadd.f32 0.0, %v1028
        %v1030 = vpop.f32.mrb[0].mxu0
        %v1031 = vpop.f32.mrb[0].mxu0
        %v1032 = vadd.f32 0.0, %v1031
        %v1033 = vpop.f32.mrb[0].mxu0
        %1034 = vmatprep.mubr.bf16.mxu0 0
        %1035 = vmatmul.mubr.bf16.gmra.mrb[0].mxu0 %v831
        %v1036 = vpop.f32.mrb[0].mxu0
        %v1037 = vadd.f32 0.0, %v1036
        %v1038 = vpop.f32.mrb[0].mxu0
        %v1039 = vpop.f32.mrb[0].mxu0
        %v1040 = vadd.f32 0.0, %v1039
        %v1041 = vpop.f32.mrb[0].mxu0
        %1042 = vmatprep.mubr.bf16.mxu0 0
        %1043 = vmatmul.mubr.bf16.gmra.mrb[0].mxu0 %v832
        %v1044 = vpop.f32.mrb[0].mxu0
        %v1045 = vadd.f32 0.0, %v1044
        %v1046 = vpop.f32.mrb[0].mxu0
        %v1047 = vpop.f32.mrb[0].mxu0
        %v1048 = vadd.f32 0.0, %v1047
        %v1049 = vpop.f32.mrb[0].mxu0
        %1050 = vmatprep.mubr.bf16.mxu0 0
        %1051 = vmatmul.mubr.bf16.gmra.mrb[0].mxu0 %v833
        %v1052 = vpop.f32.mrb[0].mxu0
        %v1053 = vadd.f32 0.0, %v1052
        %v1054 = vpop.f32.mrb[0].mxu0
        %v1055 = vpop.f32.mrb[0].mxu0
        %v1056 = vadd.f32 0.0, %v1055
        %v1057 = vpop.f32.mrb[0].mxu0
        %1058 = vdwg.mxu0
        %v1059 = vpack.c.bf16 %v936, %v933
        %v1060 = vpack.c.bf16 %v944, %v941
        %v1061 = vpack.c.bf16 %v952, %v949
        %v1062 = vpack.c.bf16 %v960, %v957
        %v1063 = vpack.c.bf16 %v968, %v965
        %v1064 = vpack.c.bf16 %v976, %v973
        %v1065 = vpack.c.bf16 %v984, %v981
        %v1066 = vpack.c.bf16 %v992, %v989
        %v1067 = vpack.c.bf16 %v1000, %v997
        %v1068 = vpack.c.bf16 %v1008, %v1005
        %v1069 = vpack.c.bf16 %v1016, %v1013
        %v1070 = vpack.c.bf16 %v1024, %v1021
        %v1071 = vpack.c.bf16 %v1032, %v1029
        %v1072 = vpack.c.bf16 %v1040, %v1037
        %v1073 = vpack.c.bf16 %v1048, %v1045
        %v1074 = vpack.c.bf16 %v1056, %v1053
        %v1075 = vld [vmem:[%s5] sm:$0x1]
        %v1077 = vlaneseq
        %v1078 = vshrl.u32 %v1077, 7
        %v1079 = vsub.s32 0, %v1078
        %v1080 = vrot.slane %v1075, %v1079
        %v1114 = vunpack.c.l.b16 %v377
        %v1115 = vunpack.c.h.b16 %v377
        %v1116 = vunpack.c.l.b16 %v378
        %v1117 = vunpack.c.h.b16 %v378
        %v1118 = vunpack.c.l.b16 %v379
        %v1119 = vunpack.c.h.b16 %v379
        %v1120 = vunpack.c.l.b16 %v380
        %v1121 = vunpack.c.h.b16 %v380
        %v1122 = vunpack.c.l.b16 %v381
        %v1123 = vunpack.c.h.b16 %v381
        %v1124 = vunpack.c.l.b16 %v382
        %v1125 = vunpack.c.h.b16 %v382
        %v1126 = vunpack.c.l.b16 %v383
        %v1127 = vunpack.c.h.b16 %v383
        %v1128 = vunpack.c.l.b16 %v384
        %v1129 = vunpack.c.h.b16 %v384
        %v1130 = vunpack.c.l.b16 %v385
        %v1131 = vunpack.c.h.b16 %v385
        %v1132 = vunpack.c.l.b16 %v386
        %v1133 = vunpack.c.h.b16 %v386
        %v1134 = vunpack.c.l.b16 %v387
        %v1135 = vunpack.c.h.b16 %v387
        %v1136 = vunpack.c.l.b16 %v388
        %v1137 = vunpack.c.h.b16 %v388
        %v1138 = vunpack.c.l.b16 %v389
        %v1139 = vunpack.c.h.b16 %v389
        %v1140 = vunpack.c.l.b16 %v390
        %v1141 = vunpack.c.h.b16 %v390
        %v1142 = vunpack.c.l.b16 %v391
        %v1143 = vunpack.c.h.b16 %v391
        %v1144 = vunpack.c.l.b16 %v392
        %v1145 = vunpack.c.h.b16 %v392
        %v1146 = vunpack.c.l.b16 %v393
        %v1147 = vunpack.c.h.b16 %v393
        %v1148 = vunpack.c.l.b16 %v394
        %v1149 = vunpack.c.h.b16 %v394
        %v1150 = vunpack.c.l.b16 %v395
        %v1151 = vunpack.c.h.b16 %v395
        %v1152 = vunpack.c.l.b16 %v396
        %v1153 = vunpack.c.h.b16 %v396
        %v1154 = vunpack.c.l.b16 %v397
        %v1155 = vunpack.c.h.b16 %v397
        %v1156 = vunpack.c.l.b16 %v398
        %v1157 = vunpack.c.h.b16 %v398
        %v1158 = vunpack.c.l.b16 %v399
        %v1159 = vunpack.c.h.b16 %v399
        %v1160 = vunpack.c.l.b16 %v400
        %v1161 = vunpack.c.h.b16 %v400
        %v1162 = vunpack.c.l.b16 %v401
        %v1163 = vunpack.c.h.b16 %v401
        %v1164 = vunpack.c.l.b16 %v402
        %v1165 = vunpack.c.h.b16 %v402
        %v1166 = vunpack.c.l.b16 %v403
        %v1167 = vunpack.c.h.b16 %v403
        %v1168 = vunpack.c.l.b16 %v404
        %v1169 = vunpack.c.h.b16 %v404
        %v1170 = vunpack.c.l.b16 %v405
        %v1171 = vunpack.c.h.b16 %v405
        %v1172 = vunpack.c.l.b16 %v406
        %v1173 = vunpack.c.h.b16 %v406
        %v1174 = vunpack.c.l.b16 %v407
        %v1175 = vunpack.c.h.b16 %v407
        %v1176 = vunpack.c.l.b16 %v408
        %v1177 = vunpack.c.h.b16 %v408
        %v1178 = vpack.c.b16 %v1116, %v1114
        %v1179 = vpack.c.b16 %v1117, %v1115
        %v1180 = vpack.c.b16 %v1120, %v1118
        %v1181 = vpack.c.b16 %v1121, %v1119
        %v1182 = vpack.c.b16 %v1124, %v1122
        %v1183 = vpack.c.b16 %v1125, %v1123
        %v1184 = vpack.c.b16 %v1128, %v1126
        %v1185 = vpack.c.b16 %v1129, %v1127
        %v1186 = vpack.c.b16 %v1132, %v1130
        %v1187 = vpack.c.b16 %v1133, %v1131
        %v1188 = vpack.c.b16 %v1136, %v1134
        %v1189 = vpack.c.b16 %v1137, %v1135
        %v1190 = vpack.c.b16 %v1140, %v1138
        %v1191 = vpack.c.b16 %v1141, %v1139
        %v1192 = vpack.c.b16 %v1144, %v1142
        %v1193 = vpack.c.b16 %v1145, %v1143
        %v1194 = vpack.c.b16 %v1148, %v1146
        %v1195 = vpack.c.b16 %v1149, %v1147
        %v1196 = vpack.c.b16 %v1152, %v1150
        %v1197 = vpack.c.b16 %v1153, %v1151
        %v1198 = vpack.c.b16 %v1156, %v1154
        %v1199 = vpack.c.b16 %v1157, %v1155
        %v1200 = vpack.c.b16 %v1160, %v1158
        %v1201 = vpack.c.b16 %v1161, %v1159
        %v1202 = vpack.c.b16 %v1164, %v1162
        %v1203 = vpack.c.b16 %v1165, %v1163
        %v1204 = vpack.c.b16 %v1168, %v1166
        %v1205 = vpack.c.b16 %v1169, %v1167
        %v1206 = vpack.c.b16 %v1172, %v1170
        %v1207 = vpack.c.b16 %v1173, %v1171
        %v1208 = vpack.c.b16 %v1176, %v1174
        %v1209 = vpack.c.b16 %v1177, %v1175
        %1242 = vmatprep.subr.bf16.mxu0 0
        %1243 = vmatpush1.bf16.msra.mxu0 %v1059
        %1244 = vmatprep.subr.bf16.mxu0 0
        %1245 = vmatpush1.bf16.msra.mxu0 %v1060
        %1246 = vmatprep.subr.bf16.mxu0 0
        %1247 = vmatpush1.bf16.msra.mxu0 %v1061
        %1248 = vmatprep.subr.bf16.mxu0 0
        %1249 = vmatpush1.bf16.msra.mxu0 %v1062
        %1250 = vmatprep.subr.bf16.mxu0 0
        %1251 = vmatpush1.bf16.msra.mxu0 %v1063
        %1252 = vmatprep.subr.bf16.mxu0 0
        %1253 = vmatpush1.bf16.msra.mxu0 %v1064
        %1254 = vmatprep.subr.bf16.mxu0 0
        %1255 = vmatpush1.bf16.msra.mxu0 %v1065
        %1256 = vmatprep.subr.bf16.mxu0 0
        %1257 = vmatpush1.bf16.msra.mxu0 %v1066
        %1258 = vmatprep.subr.bf16.mxu0 0
        %1259 = vmatpush1.bf16.msra.mxu0 %v1067
        %1260 = vmatprep.subr.bf16.mxu0 0
        %1261 = vmatpush1.bf16.msra.mxu0 %v1068
        %1262 = vmatprep.subr.bf16.mxu0 0
        %1263 = vmatpush1.bf16.msra.mxu0 %v1069
        %1264 = vmatprep.subr.bf16.mxu0 0
        %1265 = vmatpush1.bf16.msra.mxu0 %v1070
        %1266 = vmatprep.subr.bf16.mxu0 0
        %1267 = vmatpush1.bf16.msra.mxu0 %v1071
        %1268 = vmatprep.subr.bf16.mxu0 0
        %1269 = vmatpush1.bf16.msra.mxu0 %v1072
        %1270 = vmatprep.subr.bf16.mxu0 0
        %1271 = vmatpush1.bf16.msra.mxu0 %v1073
        %1272 = vmatprep.subr.bf16.mxu0 0
        %1273 = vmatpush1.bf16.msra.mxu0 %v1074
        %1274 = vmatprep.mubr.bf16.mxu0 %v1179
        %1275 = vmatmul.mubr.bf16.gmra.mrb[0].mxu0 %v1178
        %v1276 = vpop.f32.mrb[0].mxu0
        %v1277 = vadd.f32 %v1080, %v1276
        %v1278 = vpop.f32.mrb[0].mxu0
        %v1279 = vpop.f32.mrb[0].mxu0
        %v1280 = vadd.f32 %v1080, %v1279
        %v1281 = vpop.f32.mrb[0].mxu0
        %1282 = vmatprep.mubr.bf16.mxu0 %v1181
        %1283 = vmatmul.mubr.bf16.gmra.mrb[0].mxu0 %v1180
        %v1284 = vpop.f32.mrb[0].mxu0
        %v1285 = vadd.f32 %v1080, %v1284
        %v1286 = vpop.f32.mrb[0].mxu0
        %v1287 = vpop.f32.mrb[0].mxu0
        %v1288 = vadd.f32 %v1080, %v1287
        %v1289 = vpop.f32.mrb[0].mxu0
        %1290 = vmatprep.mubr.bf16.mxu0 %v1183
        %1291 = vmatmul.mubr.bf16.gmra.mrb[0].mxu0 %v1182
        %v1292 = vpop.f32.mrb[0].mxu0
        %v1293 = vadd.f32 %v1080, %v1292
        %v1294 = vpop.f32.mrb[0].mxu0
        %v1295 = vpop.f32.mrb[0].mxu0
        %v1296 = vadd.f32 %v1080, %v1295
        %v1297 = vpop.f32.mrb[0].mxu0
        %1298 = vmatprep.mubr.bf16.mxu0 %v1185
        %1299 = vmatmul.mubr.bf16.gmra.mrb[0].mxu0 %v1184
        %v1300 = vpop.f32.mrb[0].mxu0
        %v1301 = vadd.f32 %v1080, %v1300
        %v1302 = vpop.f32.mrb[0].mxu0
        %v1303 = vpop.f32.mrb[0].mxu0
        %v1304 = vadd.f32 %v1080, %v1303
        %v1305 = vpop.f32.mrb[0].mxu0
        %1306 = vmatprep.mubr.bf16.mxu0 %v1187
        %1307 = vmatmul.mubr.bf16.gmra.mrb[0].mxu0 %v1186
        %v1308 = vpop.f32.mrb[0].mxu0
        %v1309 = vadd.f32 %v1080, %v1308
        %v1310 = vpop.f32.mrb[0].mxu0
        %v1311 = vpop.f32.mrb[0].mxu0
        %v1312 = vadd.f32 %v1080, %v1311
        %v1313 = vpop.f32.mrb[0].mxu0
        %1314 = vmatprep.mubr.bf16.mxu0 %v1189
        %1315 = vmatmul.mubr.bf16.gmra.mrb[0].mxu0 %v1188
        %v1316 = vpop.f32.mrb[0].mxu0
        %v1317 = vadd.f32 %v1080, %v1316
        %v1318 = vpop.f32.mrb[0].mxu0
        %v1319 = vpop.f32.mrb[0].mxu0
        %v1320 = vadd.f32 %v1080, %v1319
        %v1321 = vpop.f32.mrb[0].mxu0
        %1322 = vmatprep.mubr.bf16.mxu0 %v1191
        %1323 = vmatmul.mubr.bf16.gmra.mrb[0].mxu0 %v1190
        %v1324 = vpop.f32.mrb[0].mxu0
        %v1325 = vadd.f32 %v1080, %v1324
        %v1326 = vpop.f32.mrb[0].mxu0
        %v1327 = vpop.f32.mrb[0].mxu0
        %v1328 = vadd.f32 %v1080, %v1327
        %v1329 = vpop.f32.mrb[0].mxu0
        %1330 = vmatprep.mubr.bf16.mxu0 %v1193
        %1331 = vmatmul.mubr.bf16.gmra.mrb[0].mxu0 %v1192
        %v1332 = vpop.f32.mrb[0].mxu0
        %v1333 = vadd.f32 %v1080, %v1332
        %v1334 = vpop.f32.mrb[0].mxu0
        %v1335 = vpop.f32.mrb[0].mxu0
        %v1336 = vadd.f32 %v1080, %v1335
        %v1337 = vpop.f32.mrb[0].mxu0
        %1338 = vmatprep.mubr.bf16.mxu0 %v1195
        %1339 = vmatmul.mubr.bf16.gmra.mrb[0].mxu0 %v1194
        %v1340 = vpop.f32.mrb[0].mxu0
        %v1341 = vadd.f32 %v1080, %v1340
        %v1342 = vpop.f32.mrb[0].mxu0
        %v1343 = vpop.f32.mrb[0].mxu0
        %v1344 = vadd.f32 %v1080, %v1343
        %v1345 = vpop.f32.mrb[0].mxu0
        %1346 = vmatprep.mubr.bf16.mxu0 %v1197
        %1347 = vmatmul.mubr.bf16.gmra.mrb[0].mxu0 %v1196
        %v1348 = vpop.f32.mrb[0].mxu0
        %v1349 = vadd.f32 %v1080, %v1348
        %v1350 = vpop.f32.mrb[0].mxu0
        %v1351 = vpop.f32.mrb[0].mxu0
        %v1352 = vadd.f32 %v1080, %v1351
        %v1353 = vpop.f32.mrb[0].mxu0
        %1354 = vmatprep.mubr.bf16.mxu0 %v1199
        %1355 = vmatmul.mubr.bf16.gmra.mrb[0].mxu0 %v1198
        %v1356 = vpop.f32.mrb[0].mxu0
        %v1357 = vadd.f32 %v1080, %v1356
        %v1358 = vpop.f32.mrb[0].mxu0
        %v1359 = vpop.f32.mrb[0].mxu0
        %v1360 = vadd.f32 %v1080, %v1359
        %v1361 = vpop.f32.mrb[0].mxu0
        %1362 = vmatprep.mubr.bf16.mxu0 %v1201
        %1363 = vmatmul.mubr.bf16.gmra.mrb[0].mxu0 %v1200
        %v1364 = vpop.f32.mrb[0].mxu0
        %v1365 = vadd.f32 %v1080, %v1364
        %v1366 = vpop.f32.mrb[0].mxu0
        %v1367 = vpop.f32.mrb[0].mxu0
        %v1368 = vadd.f32 %v1080, %v1367
        %v1369 = vpop.f32.mrb[0].mxu0
        %1370 = vmatprep.mubr.bf16.mxu0 %v1203
        %1371 = vmatmul.mubr.bf16.gmra.mrb[0].mxu0 %v1202
        %v1372 = vpop.f32.mrb[0].mxu0
        %v1373 = vadd.f32 %v1080, %v1372
        %v1374 = vpop.f32.mrb[0].mxu0
        %v1375 = vpop.f32.mrb[0].mxu0
        %v1376 = vadd.f32 %v1080, %v1375
        %v1377 = vpop.f32.mrb[0].mxu0
        %1378 = vmatprep.mubr.bf16.mxu0 %v1205
        %1379 = vmatmul.mubr.bf16.gmra.mrb[0].mxu0 %v1204
        %v1380 = vpop.f32.mrb[0].mxu0
        %v1381 = vadd.f32 %v1080, %v1380
        %v1382 = vpop.f32.mrb[0].mxu0
        %v1383 = vpop.f32.mrb[0].mxu0
        %v1384 = vadd.f32 %v1080, %v1383
        %v1385 = vpop.f32.mrb[0].mxu0
        %1386 = vmatprep.mubr.bf16.mxu0 %v1207
        %1387 = vmatmul.mubr.bf16.gmra.mrb[0].mxu0 %v1206
        %v1388 = vpop.f32.mrb[0].mxu0
        %v1389 = vadd.f32 %v1080, %v1388
        %v1390 = vpop.f32.mrb[0].mxu0
        %v1391 = vpop.f32.mrb[0].mxu0
        %v1392 = vadd.f32 %v1080, %v1391
        %v1393 = vpop.f32.mrb[0].mxu0
        %1394 = vmatprep.mubr.bf16.mxu0 %v1209
        %1395 = vmatmul.mubr.bf16.gmra.mrb[0].mxu0 %v1208
        %v1396 = vpop.f32.mrb[0].mxu0
        %v1397 = vadd.f32 %v1080, %v1396
        %v1398 = vpop.f32.mrb[0].mxu0
        %v1399 = vpop.f32.mrb[0].mxu0
        %v1400 = vadd.f32 %v1080, %v1399
        %v1401 = vpop.f32.mrb[0].mxu0
        %1402 = vdwg.mxu0
        %v1403 = vpack.c.bf16 %v1280, %v1277
        %v1404 = vpack.c.bf16 %v1288, %v1285
        %v1405 = vpack.c.bf16 %v1296, %v1293
        %v1406 = vpack.c.bf16 %v1304, %v1301
        %v1407 = vpack.c.bf16 %v1312, %v1309
        %v1408 = vpack.c.bf16 %v1320, %v1317
        %v1409 = vpack.c.bf16 %v1328, %v1325
        %v1410 = vpack.c.bf16 %v1336, %v1333
        %v1411 = vpack.c.bf16 %v1344, %v1341
        %v1412 = vpack.c.bf16 %v1352, %v1349
        %v1413 = vpack.c.bf16 %v1360, %v1357
        %v1414 = vpack.c.bf16 %v1368, %v1365
        %v1415 = vpack.c.bf16 %v1376, %v1373
        %v1416 = vpack.c.bf16 %v1384, %v1381
        %v1417 = vpack.c.bf16 %v1392, %v1389
        %v1418 = vpack.c.bf16 %v1400, %v1397
        %v1419 = vld [vmem:[%s6] sm:$0xf]
        %v1420 = vld [vmem:[%s6 + $0x4] sm:$0xf]
        %v1421 = vld [vmem:[%s6 + $0x8] sm:$0xf]
        %v1422 = vld [vmem:[%s6 + $0xc] sm:$0xf]
        %v1423 = vld [vmem:[%s6 + $0x10] sm:$0xf]
        %v1424 = vld [vmem:[%s6 + $0x14] sm:$0xf]
        %v1425 = vld [vmem:[%s6 + $0x18] sm:$0xf]
        %v1426 = vld [vmem:[%s6 + $0x1c] sm:$0xf]
        %v1427 = vld [vmem:[%s6 + $0x20] sm:$0xf]
        %v1428 = vld [vmem:[%s6 + $0x24] sm:$0xf]
        %v1429 = vld [vmem:[%s6 + $0x28] sm:$0xf]
        %v1430 = vld [vmem:[%s6 + $0x2c] sm:$0xf]
        %v1431 = vld [vmem:[%s6 + $0x30] sm:$0xf]
        %v1432 = vld [vmem:[%s6 + $0x34] sm:$0xf]
        %v1433 = vld [vmem:[%s6 + $0x38] sm:$0xf]
        %v1434 = vld [vmem:[%s6 + $0x3c] sm:$0xf]
        %v1451 = vunpack.c.l.b16 %v1419
        %v1452 = vunpack.c.l.b16 %v1420
        %v1453 = vunpack.c.l.b16 %v1421
        %v1454 = vunpack.c.l.b16 %v1422
        %v1455 = vunpack.c.l.b16 %v1423
        %v1456 = vunpack.c.l.b16 %v1424
        %v1457 = vunpack.c.l.b16 %v1425
        %v1458 = vunpack.c.l.b16 %v1426
        %v1459 = vunpack.c.l.b16 %v1427
        %v1460 = vunpack.c.l.b16 %v1428
        %v1461 = vunpack.c.l.b16 %v1429
        %v1462 = vunpack.c.l.b16 %v1430
        %v1463 = vunpack.c.l.b16 %v1431
        %v1464 = vunpack.c.l.b16 %v1432
        %v1465 = vunpack.c.l.b16 %v1433
        %v1466 = vunpack.c.l.b16 %v1434
        %v1467 = vpack.c.b16 %v1452, %v1451
        %v1468 = vpack.c.b16 %v1454, %v1453
        %v1469 = vpack.c.b16 %v1456, %v1455
        %v1470 = vpack.c.b16 %v1458, %v1457
        %v1471 = vpack.c.b16 %v1460, %v1459
        %v1472 = vpack.c.b16 %v1462, %v1461
        %v1473 = vpack.c.b16 %v1464, %v1463
        %v1474 = vpack.c.b16 %v1466, %v1465
        %1483 = vmatprep.subr.bf16.mxu0 0
        %1484 = vmatpush1.bf16.msra.mxu0 %v1467
        %1485 = vmatprep.subr.bf16.mxu0 0
        %1486 = vmatpush1.bf16.msra.mxu0 %v1468
        %1487 = vmatprep.subr.bf16.mxu0 0
        %1488 = vmatpush1.bf16.msra.mxu0 %v1469
        %1489 = vmatprep.subr.bf16.mxu0 0
        %1490 = vmatpush1.bf16.msra.mxu0 %v1470
        %1491 = vmatprep.subr.bf16.mxu0 0
        %1492 = vmatpush1.bf16.msra.mxu0 %v1471
        %1493 = vmatprep.subr.bf16.mxu0 0
        %1494 = vmatpush1.bf16.msra.mxu0 %v1472
        %1495 = vmatprep.subr.bf16.mxu0 0
        %1496 = vmatpush1.bf16.msra.mxu0 %v1473
        %1497 = vmatprep.subr.bf16.mxu0 0
        %1498 = vmatpush1.bf16.msra.mxu0 %v1474
        %1499 = vmatprep.subr.bf16.mxu0 0
        %1500 = vmatpush1.bf16.msra.mxu0 0
        %1501 = vmatprep.subr.bf16.mxu0 0
        %1502 = vmatpush1.bf16.msra.mxu0 0
        %1503 = vmatprep.subr.bf16.mxu0 0
        %1504 = vmatpush1.bf16.msra.mxu0 0
        %1505 = vmatprep.subr.bf16.mxu0 0
        %1506 = vmatpush1.bf16.msra.mxu0 0
        %1507 = vmatprep.subr.bf16.mxu0 0
        %1508 = vmatpush1.bf16.msra.mxu0 0
        %1509 = vmatprep.subr.bf16.mxu0 0
        %1510 = vmatpush1.bf16.msra.mxu0 0
        %1511 = vmatprep.subr.bf16.mxu0 0
        %1512 = vmatpush1.bf16.msra.mxu0 0
        %1513 = vmatprep.subr.bf16.mxu0 0
        %1514 = vmatpush1.bf16.msra.mxu0 0
        %1515 = vmatprep.mubr.bf16.mxu0 0
        %1516 = vmatmul.mubr.bf16.gmra.mrb[0].mxu0 %v1403
        %v1517 = vpop.f32.mrb[0].mxu0
        %v1518 = vadd.f32 0.0, %v1517
        %v1519 = vpop.f32.mrb[0].mxu0
        %v1520 = vpop.f32.mrb[0].mxu0
        %v1521 = vadd.f32 0.0, %v1520
        %v1522 = vpop.f32.mrb[0].mxu0
        %1523 = vmatprep.mubr.bf16.mxu0 0
        %1524 = vmatmul.mubr.bf16.gmra.mrb[0].mxu0 %v1404
        %v1525 = vpop.f32.mrb[0].mxu0
        %v1526 = vadd.f32 0.0, %v1525
        %v1527 = vpop.f32.mrb[0].mxu0
        %v1528 = vpop.f32.mrb[0].mxu0
        %v1529 = vadd.f32 0.0, %v1528
        %v1530 = vpop.f32.mrb[0].mxu0
        %1531 = vmatprep.mubr.bf16.mxu0 0
        %1532 = vmatmul.mubr.bf16.gmra.mrb[0].mxu0 %v1405
        %v1533 = vpop.f32.mrb[0].mxu0
        %v1534 = vadd.f32 0.0, %v1533
        %v1535 = vpop.f32.mrb[0].mxu0
        %v1536 = vpop.f32.mrb[0].mxu0
        %v1537 = vadd.f32 0.0, %v1536
        %v1538 = vpop.f32.mrb[0].mxu0
        %1539 = vmatprep.mubr.bf16.mxu0 0
        %1540 = vmatmul.mubr.bf16.gmra.mrb[0].mxu0 %v1406
        %v1541 = vpop.f32.mrb[0].mxu0
        %v1542 = vadd.f32 0.0, %v1541
        %v1543 = vpop.f32.mrb[0].mxu0
        %v1544 = vpop.f32.mrb[0].mxu0
        %v1545 = vadd.f32 0.0, %v1544
        %v1546 = vpop.f32.mrb[0].mxu0
        %1547 = vmatprep.mubr.bf16.mxu0 0
        %1548 = vmatmul.mubr.bf16.gmra.mrb[0].mxu0 %v1407
        %v1549 = vpop.f32.mrb[0].mxu0
        %v1550 = vadd.f32 0.0, %v1549
        %v1551 = vpop.f32.mrb[0].mxu0
        %v1552 = vpop.f32.mrb[0].mxu0
        %v1553 = vadd.f32 0.0, %v1552
        %v1554 = vpop.f32.mrb[0].mxu0
        %1555 = vmatprep.mubr.bf16.mxu0 0
        %1556 = vmatmul.mubr.bf16.gmra.mrb[0].mxu0 %v1408
        %v1557 = vpop.f32.mrb[0].mxu0
        %v1558 = vadd.f32 0.0, %v1557
        %v1559 = vpop.f32.mrb[0].mxu0
        %v1560 = vpop.f32.mrb[0].mxu0
        %v1561 = vadd.f32 0.0, %v1560
        %v1562 = vpop.f32.mrb[0].mxu0
        %1563 = vmatprep.mubr.bf16.mxu0 0
        %1564 = vmatmul.mubr.bf16.gmra.mrb[0].mxu0 %v1409
        %v1565 = vpop.f32.mrb[0].mxu0
        %v1566 = vadd.f32 0.0, %v1565
        %v1567 = vpop.f32.mrb[0].mxu0
        %v1568 = vpop.f32.mrb[0].mxu0
        %v1569 = vadd.f32 0.0, %v1568
        %v1570 = vpop.f32.mrb[0].mxu0
        %1571 = vmatprep.mubr.bf16.mxu0 0
        %1572 = vmatmul.mubr.bf16.gmra.mrb[0].mxu0 %v1410
        %v1573 = vpop.f32.mrb[0].mxu0
        %v1574 = vadd.f32 0.0, %v1573
        %v1575 = vpop.f32.mrb[0].mxu0
        %v1576 = vpop.f32.mrb[0].mxu0
        %v1577 = vadd.f32 0.0, %v1576
        %v1578 = vpop.f32.mrb[0].mxu0
        %1579 = vmatprep.mubr.bf16.mxu0 0
        %1580 = vmatmul.mubr.bf16.gmra.mrb[0].mxu0 %v1411
        %v1581 = vpop.f32.mrb[0].mxu0
        %v1582 = vadd.f32 0.0, %v1581
        %v1583 = vpop.f32.mrb[0].mxu0
        %v1584 = vpop.f32.mrb[0].mxu0
        %v1585 = vadd.f32 0.0, %v1584
        %v1586 = vpop.f32.mrb[0].mxu0
        %1587 = vmatprep.mubr.bf16.mxu0 0
        %1588 = vmatmul.mubr.bf16.gmra.mrb[0].mxu0 %v1412
        %v1589 = vpop.f32.mrb[0].mxu0
        %v1590 = vadd.f32 0.0, %v1589
        %v1591 = vpop.f32.mrb[0].mxu0
        %v1592 = vpop.f32.mrb[0].mxu0
        %v1593 = vadd.f32 0.0, %v1592
        %v1594 = vpop.f32.mrb[0].mxu0
        %1595 = vmatprep.mubr.bf16.mxu0 0
        %1596 = vmatmul.mubr.bf16.gmra.mrb[0].mxu0 %v1413
        %v1597 = vpop.f32.mrb[0].mxu0
        %v1598 = vadd.f32 0.0, %v1597
        %v1599 = vpop.f32.mrb[0].mxu0
        %v1600 = vpop.f32.mrb[0].mxu0
        %v1601 = vadd.f32 0.0, %v1600
        %v1602 = vpop.f32.mrb[0].mxu0
        %1603 = vmatprep.mubr.bf16.mxu0 0
        %1604 = vmatmul.mubr.bf16.gmra.mrb[0].mxu0 %v1414
        %v1605 = vpop.f32.mrb[0].mxu0
        %v1606 = vadd.f32 0.0, %v1605
        %v1607 = vpop.f32.mrb[0].mxu0
        %v1608 = vpop.f32.mrb[0].mxu0
        %v1609 = vadd.f32 0.0, %v1608
        %v1610 = vpop.f32.mrb[0].mxu0
        %1611 = vmatprep.mubr.bf16.mxu0 0
        %1612 = vmatmul.mubr.bf16.gmra.mrb[0].mxu0 %v1415
        %v1613 = vpop.f32.mrb[0].mxu0
        %v1614 = vadd.f32 0.0, %v1613
        %v1615 = vpop.f32.mrb[0].mxu0
        %v1616 = vpop.f32.mrb[0].mxu0
        %v1617 = vadd.f32 0.0, %v1616
        %v1618 = vpop.f32.mrb[0].mxu0
        %1619 = vmatprep.mubr.bf16.mxu0 0
        %1620 = vmatmul.mubr.bf16.gmra.mrb[0].mxu0 %v1416
        %v1621 = vpop.f32.mrb[0].mxu0
        %v1622 = vadd.f32 0.0, %v1621
        %v1623 = vpop.f32.mrb[0].mxu0
        %v1624 = vpop.f32.mrb[0].mxu0
        %v1625 = vadd.f32 0.0, %v1624
        %v1626 = vpop.f32.mrb[0].mxu0
        %1627 = vmatprep.mubr.bf16.mxu0 0
        %1628 = vmatmul.mubr.bf16.gmra.mrb[0].mxu0 %v1417
        %v1629 = vpop.f32.mrb[0].mxu0
        %v1630 = vadd.f32 0.0, %v1629
        %v1631 = vpop.f32.mrb[0].mxu0
        %v1632 = vpop.f32.mrb[0].mxu0
        %v1633 = vadd.f32 0.0, %v1632
        %v1634 = vpop.f32.mrb[0].mxu0
        %1635 = vmatprep.mubr.bf16.mxu0 0
        %1636 = vmatmul.mubr.bf16.gmra.mrb[0].mxu0 %v1418
        %v1637 = vpop.f32.mrb[0].mxu0
        %v1638 = vadd.f32 0.0, %v1637
        %v1639 = vpop.f32.mrb[0].mxu0
        %v1640 = vpop.f32.mrb[0].mxu0
        %v1641 = vadd.f32 0.0, %v1640
        %v1642 = vpop.f32.mrb[0].mxu0
        %1643 = vdwg.mxu0
        %v1644 = vpack.c.bf16 %v1521, %v1518
        %v1645 = vpack.c.bf16 %v1529, %v1526
        %v1646 = vpack.c.bf16 %v1537, %v1534
        %v1647 = vpack.c.bf16 %v1545, %v1542
        %v1648 = vpack.c.bf16 %v1553, %v1550
        %v1649 = vpack.c.bf16 %v1561, %v1558
        %v1650 = vpack.c.bf16 %v1569, %v1566
        %v1651 = vpack.c.bf16 %v1577, %v1574
        %v1652 = vpack.c.bf16 %v1585, %v1582
        %v1653 = vpack.c.bf16 %v1593, %v1590
        %v1654 = vpack.c.bf16 %v1601, %v1598
        %v1655 = vpack.c.bf16 %v1609, %v1606
        %v1656 = vpack.c.bf16 %v1617, %v1614
        %v1657 = vpack.c.bf16 %v1625, %v1622
        %v1658 = vpack.c.bf16 %v1633, %v1630
        %v1659 = vpack.c.bf16 %v1641, %v1638
        %v1660 = vld [vmem:[%s7] sm:$0x1]
        %v1662 = vlaneseq
        %v1663 = vshrl.u32 %v1662, 7
        %v1664 = vsub.s32 0, %v1663
        %v1665 = vrot.slane %v1660, %v1664
        %1667 = vmatprep.subr.bf16.mxu0 0
        %1668 = vmatpush1.bf16.msra.mxu0 %v1644
        %1669 = vmatprep.subr.bf16.mxu0 0
        %1670 = vmatpush1.bf16.msra.mxu0 %v1645
        %1671 = vmatprep.subr.bf16.mxu0 0
        %1672 = vmatpush1.bf16.msra.mxu0 %v1646
        %1673 = vmatprep.subr.bf16.mxu0 0
        %1674 = vmatpush1.bf16.msra.mxu0 %v1647
        %1675 = vmatprep.subr.bf16.mxu0 0
        %1676 = vmatpush1.bf16.msra.mxu0 %v1648
        %1677 = vmatprep.subr.bf16.mxu0 0
        %1678 = vmatpush1.bf16.msra.mxu0 %v1649
        %1679 = vmatprep.subr.bf16.mxu0 0
        %1680 = vmatpush1.bf16.msra.mxu0 %v1650
        %1681 = vmatprep.subr.bf16.mxu0 0
        %1682 = vmatpush1.bf16.msra.mxu0 %v1651
        %1683 = vmatprep.subr.bf16.mxu0 0
        %1684 = vmatpush1.bf16.msra.mxu0 %v1652
        %1685 = vmatprep.subr.bf16.mxu0 0
        %1686 = vmatpush1.bf16.msra.mxu0 %v1653
        %1687 = vmatprep.subr.bf16.mxu0 0
        %1688 = vmatpush1.bf16.msra.mxu0 %v1654
        %1689 = vmatprep.subr.bf16.mxu0 0
        %1690 = vmatpush1.bf16.msra.mxu0 %v1655
        %1691 = vmatprep.subr.bf16.mxu0 0
        %1692 = vmatpush1.bf16.msra.mxu0 %v1656
        %1693 = vmatprep.subr.bf16.mxu0 0
        %1694 = vmatpush1.bf16.msra.mxu0 %v1657
        %1695 = vmatprep.subr.bf16.mxu0 0
        %1696 = vmatpush1.bf16.msra.mxu0 %v1658
        %1697 = vmatprep.subr.bf16.mxu0 0
        %1698 = vmatpush1.bf16.msra.mxu0 %v1659
        %1699 = vmatprep.mubr.bf16.mxu0 %v1179
        %1700 = vmatmul.mubr.bf16.gmra.mrb[0].mxu0 %v1178
        %v1701 = vpop.f32.mrb[0].mxu0
        %v1702 = vadd.f32 %v1665, %v1701
        %v1703 = vpop.f32.mrb[0].mxu0
        %v1704 = vpop.f32.mrb[0].mxu0
        %v1705 = vadd.f32 %v1665, %v1704
        %v1706 = vpop.f32.mrb[0].mxu0
        %1707 = vmatprep.mubr.bf16.mxu0 %v1181
        %1708 = vmatmul.mubr.bf16.gmra.mrb[0].mxu0 %v1180
        %v1709 = vpop.f32.mrb[0].mxu0
        %v1710 = vadd.f32 %v1665, %v1709
        %v1711 = vpop.f32.mrb[0].mxu0
        %v1712 = vpop.f32.mrb[0].mxu0
        %v1713 = vadd.f32 %v1665, %v1712
        %v1714 = vpop.f32.mrb[0].mxu0
        %1715 = vmatprep.mubr.bf16.mxu0 %v1183
        %1716 = vmatmul.mubr.bf16.gmra.mrb[0].mxu0 %v1182
        %v1717 = vpop.f32.mrb[0].mxu0
        %v1718 = vadd.f32 %v1665, %v1717
        %v1719 = vpop.f32.mrb[0].mxu0
        %v1720 = vpop.f32.mrb[0].mxu0
        %v1721 = vadd.f32 %v1665, %v1720
        %v1722 = vpop.f32.mrb[0].mxu0
        %1723 = vmatprep.mubr.bf16.mxu0 %v1185
        %1724 = vmatmul.mubr.bf16.gmra.mrb[0].mxu0 %v1184
        %v1725 = vpop.f32.mrb[0].mxu0
        %v1726 = vadd.f32 %v1665, %v1725
        %v1727 = vpop.f32.mrb[0].mxu0
        %v1728 = vpop.f32.mrb[0].mxu0
        %v1729 = vadd.f32 %v1665, %v1728
        %v1730 = vpop.f32.mrb[0].mxu0
        %1731 = vmatprep.mubr.bf16.mxu0 %v1187
        %1732 = vmatmul.mubr.bf16.gmra.mrb[0].mxu0 %v1186
        %v1733 = vpop.f32.mrb[0].mxu0
        %v1734 = vadd.f32 %v1665, %v1733
        %v1735 = vpop.f32.mrb[0].mxu0
        %v1736 = vpop.f32.mrb[0].mxu0
        %v1737 = vadd.f32 %v1665, %v1736
        %v1738 = vpop.f32.mrb[0].mxu0
        %1739 = vmatprep.mubr.bf16.mxu0 %v1189
        %1740 = vmatmul.mubr.bf16.gmra.mrb[0].mxu0 %v1188
        %v1741 = vpop.f32.mrb[0].mxu0
        %v1742 = vadd.f32 %v1665, %v1741
        %v1743 = vpop.f32.mrb[0].mxu0
        %v1744 = vpop.f32.mrb[0].mxu0
        %v1745 = vadd.f32 %v1665, %v1744
        %v1746 = vpop.f32.mrb[0].mxu0
        %1747 = vmatprep.mubr.bf16.mxu0 %v1191
        %1748 = vmatmul.mubr.bf16.gmra.mrb[0].mxu0 %v1190
        %v1749 = vpop.f32.mrb[0].mxu0
        %v1750 = vadd.f32 %v1665, %v1749
        %v1751 = vpop.f32.mrb[0].mxu0
        %v1752 = vpop.f32.mrb[0].mxu0
        %v1753 = vadd.f32 %v1665, %v1752
        %v1754 = vpop.f32.mrb[0].mxu0
        %1755 = vmatprep.mubr.bf16.mxu0 %v1193
        %1756 = vmatmul.mubr.bf16.gmra.mrb[0].mxu0 %v1192
        %v1757 = vpop.f32.mrb[0].mxu0
        %v1758 = vadd.f32 %v1665, %v1757
        %v1759 = vpop.f32.mrb[0].mxu0
        %v1760 = vpop.f32.mrb[0].mxu0
        %v1761 = vadd.f32 %v1665, %v1760
        %v1762 = vpop.f32.mrb[0].mxu0
        %1763 = vmatprep.mubr.bf16.mxu0 %v1195
        %1764 = vmatmul.mubr.bf16.gmra.mrb[0].mxu0 %v1194
        %v1765 = vpop.f32.mrb[0].mxu0
        %v1766 = vadd.f32 %v1665, %v1765
        %v1767 = vpop.f32.mrb[0].mxu0
        %v1768 = vpop.f32.mrb[0].mxu0
        %v1769 = vadd.f32 %v1665, %v1768
        %v1770 = vpop.f32.mrb[0].mxu0
        %1771 = vmatprep.mubr.bf16.mxu0 %v1197
        %1772 = vmatmul.mubr.bf16.gmra.mrb[0].mxu0 %v1196
        %v1773 = vpop.f32.mrb[0].mxu0
        %v1774 = vadd.f32 %v1665, %v1773
        %v1775 = vpop.f32.mrb[0].mxu0
        %v1776 = vpop.f32.mrb[0].mxu0
        %v1777 = vadd.f32 %v1665, %v1776
        %v1778 = vpop.f32.mrb[0].mxu0
        %1779 = vmatprep.mubr.bf16.mxu0 %v1199
        %1780 = vmatmul.mubr.bf16.gmra.mrb[0].mxu0 %v1198
        %v1781 = vpop.f32.mrb[0].mxu0
        %v1782 = vadd.f32 %v1665, %v1781
        %v1783 = vpop.f32.mrb[0].mxu0
        %v1784 = vpop.f32.mrb[0].mxu0
        %v1785 = vadd.f32 %v1665, %v1784
        %v1786 = vpop.f32.mrb[0].mxu0
        %1787 = vmatprep.mubr.bf16.mxu0 %v1201
        %1788 = vmatmul.mubr.bf16.gmra.mrb[0].mxu0 %v1200
        %v1789 = vpop.f32.mrb[0].mxu0
        %v1790 = vadd.f32 %v1665, %v1789
        %v1791 = vpop.f32.mrb[0].mxu0
        %v1792 = vpop.f32.mrb[0].mxu0
        %v1793 = vadd.f32 %v1665, %v1792
        %v1794 = vpop.f32.mrb[0].mxu0
        %1795 = vmatprep.mubr.bf16.mxu0 %v1203
        %1796 = vmatmul.mubr.bf16.gmra.mrb[0].mxu0 %v1202
        %v1797 = vpop.f32.mrb[0].mxu0
        %v1798 = vadd.f32 %v1665, %v1797
        %v1799 = vpop.f32.mrb[0].mxu0
        %v1800 = vpop.f32.mrb[0].mxu0
        %v1801 = vadd.f32 %v1665, %v1800
        %v1802 = vpop.f32.mrb[0].mxu0
        %1803 = vmatprep.mubr.bf16.mxu0 %v1205
        %1804 = vmatmul.mubr.bf16.gmra.mrb[0].mxu0 %v1204
        %v1805 = vpop.f32.mrb[0].mxu0
        %v1806 = vadd.f32 %v1665, %v1805
        %v1807 = vpop.f32.mrb[0].mxu0
        %v1808 = vpop.f32.mrb[0].mxu0
        %v1809 = vadd.f32 %v1665, %v1808
        %v1810 = vpop.f32.mrb[0].mxu0
        %1811 = vmatprep.mubr.bf16.mxu0 %v1207
        %1812 = vmatmul.mubr.bf16.gmra.mrb[0].mxu0 %v1206
        %v1813 = vpop.f32.mrb[0].mxu0
        %v1814 = vadd.f32 %v1665, %v1813
        %v1815 = vpop.f32.mrb[0].mxu0
        %v1816 = vpop.f32.mrb[0].mxu0
        %v1817 = vadd.f32 %v1665, %v1816
        %v1818 = vpop.f32.mrb[0].mxu0
        %1819 = vmatprep.mubr.bf16.mxu0 %v1209
        %1820 = vmatmul.mubr.bf16.gmra.mrb[0].mxu0 %v1208
        %v1821 = vpop.f32.mrb[0].mxu0
        %v1822 = vadd.f32 %v1665, %v1821
        %v1823 = vpop.f32.mrb[0].mxu0
        %v1824 = vpop.f32.mrb[0].mxu0
        %v1825 = vadd.f32 %v1665, %v1824
        %v1826 = vpop.f32.mrb[0].mxu0
        %1827 = vdwg.mxu0
        %1828 = vst [vmem:[%s338] sm:$0xff] %v1702
        %1829 = vst [vmem:[%s338 + $0x8] sm:$0xff] %v1705
        %1830 = vst [vmem:[%s338 + $0x10] sm:$0xff] %v1710
        %1831 = vst [vmem:[%s338 + $0x18] sm:$0xff] %v1713
        %1832 = vst [vmem:[%s338 + $0x20] sm:$0xff] %v1718
        %1833 = vst [vmem:[%s338 + $0x28] sm:$0xff] %v1721
        %1834 = vst [vmem:[%s338 + $0x30] sm:$0xff] %v1726
        %1835 = vst [vmem:[%s338 + $0x38] sm:$0xff] %v1729
        %1836 = vst [vmem:[%s338 + $0x40] sm:$0xff] %v1734
        %1837 = vst [vmem:[%s338 + $0x48] sm:$0xff] %v1737
        %1838 = vst [vmem:[%s338 + $0x50] sm:$0xff] %v1742
        %1839 = vst [vmem:[%s338 + $0x58] sm:$0xff] %v1745
        %1840 = vst [vmem:[%s338 + $0x60] sm:$0xff] %v1750
        %1841 = vst [vmem:[%s338 + $0x68] sm:$0xff] %v1753
        %1842 = vst [vmem:[%s338 + $0x70] sm:$0xff] %v1758
        %1843 = vst [vmem:[%s338 + $0x78] sm:$0xff] %v1761
        %1844 = vst [vmem:[%s338 + $0x80] sm:$0xff] %v1766
        %1845 = vst [vmem:[%s338 + $0x88] sm:$0xff] %v1769
        %1846 = vst [vmem:[%s338 + $0x90] sm:$0xff] %v1774
        %1847 = vst [vmem:[%s338 + $0x98] sm:$0xff] %v1777
        %1848 = vst [vmem:[%s338 + $0xa0] sm:$0xff] %v1782
        %1849 = vst [vmem:[%s338 + $0xa8] sm:$0xff] %v1785
        %1850 = vst [vmem:[%s338 + $0xb0] sm:$0xff] %v1790
        %1851 = vst [vmem:[%s338 + $0xb8] sm:$0xff] %v1793
        %1852 = vst [vmem:[%s338 + $0xc0] sm:$0xff] %v1798
        %1853 = vst [vmem:[%s338 + $0xc8] sm:$0xff] %v1801
        %1854 = vst [vmem:[%s338 + $0xd0] sm:$0xff] %v1806
        %1855 = vst [vmem:[%s338 + $0xd8] sm:$0xff] %v1809
        %1856 = vst [vmem:[%s338 + $0xe0] sm:$0xff] %v1814
        %1857 = vst [vmem:[%s338 + $0xe8] sm:$0xff] %v1817
        %1858 = vst [vmem:[%s338 + $0xf0] sm:$0xff] %v1822
        %1859 = vst [vmem:[%s338 + $0xf8] sm:$0xff] %v1825
        %s1860 = sand.u32 %s211, 1
        %s1861 = scalar_lea.sflag [#allocation4], %s1860
        %s1862 = sand.u32 %s211, 1
        %s1863 = smul.addr %s1862, 256
        %s1864 = scalar_lea.vmem [#allocation5], %s1863
        // Predicated region
        $region57: #{tpu_custom_call.1} parent=51 // pred_check
          %p1865 = pneg %p221
        $region58: #{tpu_custom_call.1} parent=51 // pred_check_branch
          %1867 = sbr.rel (%p1865) target = $region60
        $region59: #{tpu_custom_call.1} parent=51 // pred_region
          %s1869 = ssub.s32 4096, 4096
          %1870 = vsyncadd %s1861, %s1869
          %s1871 = smul.addr %s25, 32
          %s1872 = smul.addr %s1871, 128
          %s1873 = scalar_lea.hbm %s8, %s1872
          %s1874 = sshll.u32 %s1864, 4
          %s1875 = int_to_ptr.vmem [resolvable:$true] %s1874
          %1880 = dma.vmem_to_hbm [thread:$0]  %s1875, 4096, %s1873, %s1861, 128, 128, 8
        $region60: #{tpu_custom_call.1} parent=51 // pred_fallthru
          _
      $region52: #{tpu_custom_call.1} parent=5 // pred_fallthru
        _
      %p1881 = scmp.le.s32.totalorder 2, %s20
      // Predicated region
      $region61: #{tpu_custom_call.1} parent=5 // pred_check
        %p1882 = pneg %p1881
      $region62: #{tpu_custom_call.1} parent=5 // pred_check_branch
        %1884 = sbr.rel (%p1882) target = $region64
      $region63: #{tpu_custom_call.1} parent=5 // pred_region
        %s1885 = ssub.s32 %s20, 2
        // Predicated region
        $region65: #{tpu_custom_call.1} parent=63 // pred_check
          %p1886 = pneg %p227
        $region66: #{tpu_custom_call.1} parent=63 // pred_check_branch
          %1888 = sbr.rel (%p1886) target = $region68
        $region67: #{tpu_custom_call.1} parent=63 // pred_region
          %s1889 = sand.u32 %s212, 1
          %s1890 = scalar_lea.sflag [#allocation4], %s1889
          %s1891 = sand.u32 %s212, 1
          %s1892 = smul.addr %s1891, 256
          %s1893 = scalar_lea.vmem [#allocation5], %s1892
          %1894 = dma.done %s1890, 4096
        $region68: #{tpu_custom_call.1} parent=63 // pred_fallthru
          _
      $region64: #{tpu_custom_call.1} parent=5 // pred_fallthru
        _
    $region6: #{tpu_custom_call.1} parent=1 // loop_footer
      %s24 = sadd.s32 1, %s20
    $region7: #{tpu_custom_call.1} parent=1 // loop_footer_branch
      %19 = sbr.rel target = $region3
    $region8: #{tpu_custom_call.1} parent=1 // loop_exit
      _
    %1895 = vsyncpa [#allocation3], 1
    %s1896 = scalar_lea.sflag [#allocation3], 1
    %1897 = vsyncpa %s1896, 1
    %1898 = vsyncpa [#allocation4], 1
    %s1899 = scalar_lea.sflag [#allocation4], 1
    %1900 = vsyncpa %s1899, 1

</llo_original>
